<compile_context>
chip_gen: v6e
topology: v6e:2x2x1
jax: 0.10.0
libtpu: 0.0.40
codegen_flags: <defaults>
</compile_context>

<pallas_src>
import functools

import jax
import jax.numpy as jnp
from jax import lax
from jax.experimental import pallas as pl
from jax.experimental.pallas import tpu as pltpu


# ----------------------------------------------------------------------------
# Pallas kernels
# ----------------------------------------------------------------------------
def _conv_stats_kernel(p_ref, w_ref, y_ref, psum_ref, psq_ref, acc_ref):
    """Conv-as-matmul with K tiling + fused per-tile BN statistics.

    p_ref:   (tm, tk)        im2col patch tile
    w_ref:   (tk, C_pad)     weight tile
    y_ref:   (tm, C_pad)     conv output tile (written at last K step)
    psum_ref:(1, 8, C_pad)   per-row-tile partial channel sums (sublane-blocked)
    psq_ref: (1, 8, C_pad)   per-row-tile partial channel sum-of-squares
    acc_ref: (tm, C_pad) f32 VMEM accumulator over the K grid axis
    """
    k = pl.program_id(1)

    @pl.when(k == 0)
    def _():
        acc_ref[...] = jnp.zeros_like(acc_ref)

    acc_ref[...] += jnp.dot(p_ref[...], w_ref[...],
                            preferred_element_type=jnp.float32)

    @pl.when(k == pl.num_programs(1) - 1)
    def _():
        y = acc_ref[...]
        y_ref[...] = y.astype(y_ref.dtype)
        # Partial stats: fold rows into groups of 8 sublanes (VPU adds only);
        # the tiny (n_m, 8, C) -> (C,) reduction happens once in the wrapper.
        tm_rows, c_pad = y.shape
        y3 = y.reshape(tm_rows // 8, 8, c_pad)
        psum_ref[...] = jnp.sum(y3, axis=0).reshape(1, 8, c_pad)
        psq_ref[...] = jnp.sum(y3 * y3, axis=0).reshape(1, 8, c_pad)


def _bn_lrelu_kernel(y_ref, scale_ref, shift_ref, o_ref, *, negative_slope):
    # Folded BN: z = y * scale + shift, then LeakyReLU.
    z = y_ref[...] * scale_ref[...] + shift_ref[...]
    o_ref[...] = jnp.where(z >= 0, z, negative_slope * z)


# ----------------------------------------------------------------------------
# Glue helpers (reshapes / strided slices only — no reductions / matmuls)
# ----------------------------------------------------------------------------
def _round_up(x, m):
    return (x + m - 1) // m * m


def _im2col_nhwc(x_nhwc, KH, KW, stride, padding, dilation):
    """NHWC im2col: channels stay on the lane axis, no big transpose."""
    N, H, W, C = x_nhwc.shape
    H_out = (H + 2 * padding - dilation * (KH - 1) - 1) // stride + 1
    W_out = (W + 2 * padding - dilation * (KW - 1) - 1) // stride + 1
    xp = jnp.pad(x_nhwc, ((0, 0), (padding, padding), (padding, padding), (0, 0)))
    taps = []
    for kh in range(KH):
        for kw in range(KW):
            h0 = kh * dilation
            w0 = kw * dilation
            taps.append(xp[:, h0:h0 + stride * (H_out - 1) + 1:stride,
                           w0:w0 + stride * (W_out - 1) + 1:stride, :])
    # [N, H_out, W_out, KH*KW*C]  (tap-major, channel-minor — matches the
    # weight flatten below)
    patches = jnp.concatenate(taps, axis=-1)
    # TODO(synk): for very large inputs, move the tap gather into the matmul
    # kernel (grid over KH*KW with offset index_maps on the padded NHWC input)
    # to avoid materializing the KH*KW-times-larger patches array in HBM.
    return patches.reshape(N * H_out * W_out, KH * KW * C), H_out, W_out


# ----------------------------------------------------------------------------
# ConvBlock forward
# ----------------------------------------------------------------------------
def conv_block_forward(x, weight, bias, gamma, beta, *,
                       stride=1, padding=0, dilation=1,
                       eps=1e-5, negative_slope=0.1,
                       tm=512, tk=512, mxu_dtype=jnp.float32):
    """x: [N, C_in, H, W] (NCHW), weight: [C_out, C_in, KH, KW] (OIHW)."""
    N, C_in, H, W = x.shape
    C_out, _, KH, KW = weight.shape
    # With train-mode BatchNorm the conv bias is exactly cancelled by the
    # batch-mean subtraction, so it never needs to be added.
    del bias

    x_nhwc = jnp.transpose(x, (0, 2, 3, 1))
    patches, H_out, W_out = _im2col_nhwc(x_nhwc, KH, KW, stride, padding, dilation)
    M, K = patches.shape

    # ---- tiling / lane-dense padding ----------------------------------------
    tm_eff = min(tm, _round_up(M, 8))            # multiple of 8 sublanes
    M_pad = _round_up(M, tm_eff)
    n_m = M_pad // tm_eff

    tk_eff = min(tk, _round_up(K, 128))          # multiple of 128 lanes
    n_k = pl.cdiv(K, tk_eff)
    K_pad = n_k * tk_eff

    C_pad = _round_up(C_out, 128)                # lane-dense output channels

    patches = jnp.pad(patches, ((0, M_pad - M), (0, K_pad - K))).astype(mxu_dtype)
    w_mat = weight.transpose(2, 3, 1, 0).reshape(K, C_out)     # (kh,kw,ci) x co
    w_mat = jnp.pad(w_mat, ((0, K_pad - K), (0, C_pad - C_out))).astype(mxu_dtype)

    # ---- kernel 1: conv matmul (+ fused batch-stat partials) ----------------
    y, psum, psq = pl.pallas_call(
        _conv_stats_kernel,
        out_shape=(jax.ShapeDtypeStruct((M_pad, C_pad), jnp.float32),
                   jax.ShapeDtypeStruct((n_m, 8, C_pad), jnp.float32),
                   jax.ShapeDtypeStruct((n_m, 8, C_pad), jnp.float32)),
        grid_spec=pltpu.PrefetchScalarGridSpec(
            num_scalar_prefetch=0,
            grid=(n_m, n_k),
            in_specs=[
                pl.BlockSpec((tm_eff, tk_eff), lambda i, k: (i, k)),
                pl.BlockSpec((tk_eff, C_pad), lambda i, k: (k, 0)),
            ],
            out_specs=[
                pl.BlockSpec((tm_eff, C_pad), lambda i, k: (i, 0)),
                pl.BlockSpec((1, 8, C_pad), lambda i, k: (i, 0, 0)),
                pl.BlockSpec((1, 8, C_pad), lambda i, k: (i, 0, 0)),
            ],
            scratch_shapes=[pltpu.VMEM((tm_eff, C_pad), jnp.float32)],
        ),
        compiler_params=pltpu.CompilerParams(
            dimension_semantics=("parallel", "arbitrary"),
            vmem_limit_bytes=64 * 1024 * 1024),
    )(patches, w_mat)

    # ---- tiny per-channel glue: mean / var / fold BN into scale & shift -----
    # Padded rows/channels contribute exact zeros (no bias), so dividing by
    # the true M is all that is needed.
    ch_sum = jnp.sum(psum, axis=(0, 1))                 # (C_pad,)
    ch_sq = jnp.sum(psq, axis=(0, 1))
    inv_m = 1.0 / float(M)
    mean = ch_sum * inv_m
    var = jnp.maximum(ch_sq * inv_m - mean * mean, 0.0)  # cancellation guard
    invstd = lax.rsqrt(var + eps)
    gamma_p = jnp.pad(gamma.astype(jnp.float32), (0, C_pad - C_out))
    beta_p = jnp.pad(beta.astype(jnp.float32), (0, C_pad - C_out))
    scale = (gamma_p * invstd).reshape(1, C_pad)
    shift = (beta_p - mean * gamma_p * invstd).reshape(1, C_pad)

    # ---- kernel 2: y*scale + shift, LeakyReLU (output aliased onto y) -------
    out_flat = pl.pallas_call(
        functools.partial(_bn_lrelu_kernel, negative_slope=negative_slope),
        out_shape=jax.ShapeDtypeStruct((M_pad, C_pad), jnp.float32),
        grid_spec=pltpu.PrefetchScalarGridSpec(
            num_scalar_prefetch=0,
            grid=(n_m,),
            in_specs=[
                pl.BlockSpec((tm_eff, C_pad), lambda i: (i, 0)),
                pl.BlockSpec((1, C_pad), lambda i: (0, 0)),
                pl.BlockSpec((1, C_pad), lambda i: (0, 0)),
            ],
            out_specs=pl.BlockSpec((tm_eff, C_pad), lambda i: (i, 0)),
        ),
        compiler_params=pltpu.CompilerParams(
            dimension_semantics=("parallel",),
            vmem_limit_bytes=64 * 1024 * 1024),
        input_output_aliases={0: 0},
    )(y, scale, shift)

    # back to NCHW, drop the lane / row padding
    out = out_flat[:M, :C_out].reshape(N, H_out, W_out, C_out)
    return out.transpose(0, 3, 1, 2)


# ----------------------------------------------------------------------------
# Pure-JAX reference (sanity check only)
# ----------------------------------------------------------------------------
def conv_block_reference(x, weight, bias, gamma, beta,
                         stride, padding, dilation,
                         eps=1e-5, negative_slope=0.1):
    y = lax.conv_general_dilated(
        x, weight,
        window_strides=(stride, stride),
        padding=((padding, padding), (padding, padding)),
        rhs_dilation=(dilation, dilation),
        dimension_numbers=("NCHW", "OIHW", "NCHW"),
        precision=lax.Precision.HIGHEST,
    ) + bias.reshape(1, -1, 1, 1)
    mean = jnp.mean(y, axis=(0, 2, 3), keepdims=True)
    var = jnp.mean((y - mean) ** 2, axis=(0, 2, 3), keepdims=True)
    z = (y - mean) * lax.rsqrt(var + eps)
    z = z * gamma.reshape(1, -1, 1, 1) + beta.reshape(1, -1, 1, 1)
    return jnp.where(z >= 0, z, negative_slope * z)


if __name__ == "__main__":
    # ConvBlock(in_channels=4, out_channels=8, kernel_size=3, stride=1,
    #           padding=1, dilation=1)
    in_channels, out_channels = 4, 8
    kernel_size, stride, padding, dilation = 3, 1, 1, 1
    N, H, W = 2, 16, 16

    key = jax.random.PRNGKey(0)
    kx, kw, kb = jax.random.split(key, 3)

    x = jax.random.normal(kx, (N, in_channels, H, W), dtype=jnp.float32)
    weight = 0.1 * jax.random.normal(
        kw, (out_channels, in_channels, kernel_size, kernel_size),
        dtype=jnp.float32)
    bias = 0.1 * jax.random.normal(kb, (out_channels,), dtype=jnp.float32)
    gamma = jnp.ones((out_channels,), dtype=jnp.float32)   # BN weight init
    beta = jnp.zeros((out_channels,), dtype=jnp.float32)   # BN bias init

    fwd = jax.jit(functools.partial(
        conv_block_forward, stride=stride, padding=padding, dilation=dilation))
    out = jax.block_until_ready(fwd(x, weight, bias, gamma, beta))

    ref = conv_block_reference(x, weight, bias, gamma, beta,
                               stride, padding, dilation)
    assert out.shape == (N, out_channels, H, W)
    max_err = float(jnp.max(jnp.abs(out - ref)))
    assert jnp.allclose(out, ref, atol=1e-3, rtol=1e-3), \
        f"mismatch vs reference, max abs err = {max_err}"

    print("KERNEL_OK")
</pallas_src>

<mosaic_0001>
module attributes {stable_mosaic.version = 11 : i64} {
  func.func @_conv_stats_kernel(%arg0: i32, %arg1: i32, %arg2: memref<512x128xf32, #tpu.memory_space<vmem>>, %arg3: memref<128x128xf32, #tpu.memory_space<vmem>>, %arg4: memref<512x128xf32, #tpu.memory_space<vmem>>, %arg5: memref<1x8x128xf32, #tpu.memory_space<vmem>>, %arg6: memref<1x8x128xf32, #tpu.memory_space<vmem>>, %arg7: memref<512x128xf32, #tpu.memory_space<vmem>>) attributes {dimension_semantics = [#tpu.dimension_semantics<parallel>, #tpu.dimension_semantics<arbitrary>], iteration_bounds = array<i64: 1, 1>, scalar_prefetch = 0 : i64, scratch_operands = 1 : i64, tpu.core_type = #tpu.core_type<tc>, window_params = [{transform_indices = @transform_0, window_bounds = array<i64: 512, 128>}, {transform_indices = @transform_1, window_bounds = array<i64: 128, 128>}, {transform_indices = @transform_2, window_bounds = array<i64: 512, 128>}, {transform_indices = @transform_3, window_bounds = array<i64: 1, 8, 128>}, {transform_indices = @transform_4, window_bounds = array<i64: 1, 8, 128>}]} {
    %c0_i32 = arith.constant 0 : i32
    %0 = arith.cmpi eq, %arg1, %c0_i32 : i32
    %1 = arith.extui %0 : i1 to i32
    %c0_i32_0 = arith.constant 0 : i32
    %2 = arith.cmpi ne, %1, %c0_i32_0 : i32
    scf.if %2 {
      %cst_10 = arith.constant 0.000000e+00 : f32
      %12 = vector.broadcast %cst_10 : f32 to vector<512x128xf32>
      %c0_11 = arith.constant 0 : index
      %c0_12 = arith.constant 0 : index
      %13 = vector.load %arg7[%c0_11, %c0_12] : memref<512x128xf32, #tpu.memory_space<vmem>>, vector<512x128xf32>
      tpu.vector_store %arg7[%c0_11, %c0_12], %12 {strides = array<i32>} : memref<512x128xf32, #tpu.memory_space<vmem>>, vector<512x128xf32>,
    } else {
    }
    %c0 = arith.constant 0 : index
    %c0_1 = arith.constant 0 : index
    %3 = vector.load %arg7[%c0, %c0_1] : memref<512x128xf32, #tpu.memory_space<vmem>>, vector<512x128xf32>
    %c0_2 = arith.constant 0 : index
    %c0_3 = arith.constant 0 : index
    %4 = vector.load %arg2[%c0_2, %c0_3] : memref<512x128xf32, #tpu.memory_space<vmem>>, vector<512x128xf32>
    %c0_4 = arith.constant 0 : index
    %c0_5 = arith.constant 0 : index
    %5 = vector.load %arg3[%c0_4, %c0_5] : memref<128x128xf32, #tpu.memory_space<vmem>>, vector<128x128xf32>
    %cst = arith.constant dense<0.000000e+00> : vector<512x128xf32>
    %6 = tpu.matmul %4, %5, %cst {dimension_numbers = #tpu.dot_dimension_numbers<[1], [0], [0], [1], [0, 0, 1, 1], [], []>} : vector<512x128xf32>, vector<128x128xf32>, vector<512x128xf32> -> vector<512x128xf32>
    %7 = arith.addf %3, %6 : vector<512x128xf32>
    %c0_6 = arith.constant 0 : index
    %c0_7 = arith.constant 0 : index
    %8 = vector.load %arg7[%c0_6, %c0_7] : memref<512x128xf32, #tpu.memory_space<vmem>>, vector<512x128xf32>
    tpu.vector_store %arg7[%c0_6, %c0_7], %7 {strides = array<i32>} : memref<512x128xf32, #tpu.memory_space<vmem>>, vector<512x128xf32>,
    %c0_i32_8 = arith.constant 0 : i32
    %9 = arith.cmpi eq, %arg1, %c0_i32_8 : i32
    %10 = arith.extui %9 : i1 to i32
    %c0_i32_9 = arith.constant 0 : i32
    %11 = arith.cmpi ne, %10, %c0_i32_9 : i32
    scf.if %11 {
      %c0_10 = arith.constant 0 : index
      %c0_11 = arith.constant 0 : index
      %12 = vector.load %arg7[%c0_10, %c0_11] : memref<512x128xf32, #tpu.memory_space<vmem>>, vector<512x128xf32>
      %c0_12 = arith.constant 0 : index
      %c0_13 = arith.constant 0 : index
      %13 = vector.load %arg4[%c0_12, %c0_13] : memref<512x128xf32, #tpu.memory_space<vmem>>, vector<512x128xf32>
      tpu.vector_store %arg4[%c0_12, %c0_13], %12 {strides = array<i32>} : memref<512x128xf32, #tpu.memory_space<vmem>>, vector<512x128xf32>,
      %14 = vector.shape_cast %12 : vector<512x128xf32> to vector<64x8x128xf32>
      %cst_14 = arith.constant dense<0.000000e+00> : vector<8x128xf32>
      %15 = vector.multi_reduction <add>, %14, %cst_14 [0] : vector<64x8x128xf32> to vector<8x128xf32>
      %16 = vector.shape_cast %15 : vector<8x128xf32> to vector<1x8x128xf32>
      %c0_15 = arith.constant 0 : index
      %c0_16 = arith.constant 0 : index
      %c0_17 = arith.constant 0 : index
      %17 = vector.load %arg5[%c0_15, %c0_16, %c0_17] : memref<1x8x128xf32, #tpu.memory_space<vmem>>, vector<1x8x128xf32>
      tpu.vector_store %arg5[%c0_15, %c0_16, %c0_17], %16 {strides = array<i32>} : memref<1x8x128xf32, #tpu.memory_space<vmem>>, vector<1x8x128xf32>,
      %18 = arith.mulf %14, %14 : vector<64x8x128xf32>
      %cst_18 = arith.constant dense<0.000000e+00> : vector<8x128xf32>
      %19 = vector.multi_reduction <add>, %18, %cst_18 [0] : vector<64x8x128xf32> to vector<8x128xf32>
      %20 = vector.shape_cast %19 : vector<8x128xf32> to vector<1x8x128xf32>
      %c0_19 = arith.constant 0 : index
      %c0_20 = arith.constant 0 : index
      %c0_21 = arith.constant 0 : index
      %21 = vector.load %arg6[%c0_19, %c0_20, %c0_21] : memref<1x8x128xf32, #tpu.memory_space<vmem>>, vector<1x8x128xf32>
      tpu.vector_store %arg6[%c0_19, %c0_20, %c0_21], %20 {strides = array<i32>} : memref<1x8x128xf32, #tpu.memory_space<vmem>>, vector<1x8x128xf32>,
    } else {
    }
    return
  }
  func.func @transform_0(%arg0: i32, %arg1: i32) -> (i32, i32) {
    %c0_i32 = arith.constant 0 : i32
    return %arg0, %arg1 : i32, i32
  }
  func.func @transform_1(%arg0: i32, %arg1: i32) -> (i32, i32) {
    %c0_i32 = arith.constant 0 : i32
    %c0_i32_0 = arith.constant 0 : i32
    return %arg1, %c0_i32 : i32, i32
  }
  func.func @transform_2(%arg0: i32, %arg1: i32) -> (i32, i32) {
    %c0_i32 = arith.constant 0 : i32
    %c0_i32_0 = arith.constant 0 : i32
    return %arg0, %c0_i32 : i32, i32
  }
  func.func @transform_3(%arg0: i32, %arg1: i32) -> (i32, i32, i32) {
    %c0_i32 = arith.constant 0 : i32
    %c0_i32_0 = arith.constant 0 : i32
    %c0_i32_1 = arith.constant 0 : i32
    return %arg0, %c0_i32, %c0_i32_0 : i32, i32, i32
  }
  func.func @transform_4(%arg0: i32, %arg1: i32) -> (i32, i32, i32) {
    %c0_i32 = arith.constant 0 : i32
    %c0_i32_0 = arith.constant 0 : i32
    %c0_i32_1 = arith.constant 0 : i32
    return %arg0, %c0_i32, %c0_i32_0 : i32, i32, i32
  }
}

module attributes {stable_mosaic.version = 11 : i64} {
  func.func @_bn_lrelu_kernel(%arg0: i32, %arg1: memref<512x128xf32, #tpu.memory_space<vmem>>, %arg2: memref<1x128xf32, #tpu.memory_space<vmem>>, %arg3: memref<1x128xf32, #tpu.memory_space<vmem>>, %arg4: memref<512x128xf32, #tpu.memory_space<vmem>>) attributes {dimension_semantics = [#tpu.dimension_semantics<parallel>], iteration_bounds = array<i64: 1>, scalar_prefetch = 0 : i64, scratch_operands = 0 : i64, tpu.core_type = #tpu.core_type<tc>, window_params = [{transform_indices = @transform_0, window_bounds = array<i64: 512, 128>}, {pipeline_mode = #tpu.pipeline_mode<synchronous>, transform_indices = @transform_1, window_bounds = array<i64: 1, 128>}, {pipeline_mode = #tpu.pipeline_mode<synchronous>, transform_indices = @transform_2, window_bounds = array<i64: 1, 128>}, {transform_indices = @transform_3, window_bounds = array<i64: 512, 128>}]} {
    %c0 = arith.constant 0 : index
    %c0_0 = arith.constant 0 : index
    %0 = vector.load %arg1[%c0, %c0_0] : memref<512x128xf32, #tpu.memory_space<vmem>>, vector<512x128xf32>
    %c0_1 = arith.constant 0 : index
    %c0_2 = arith.constant 0 : index
    %1 = vector.load %arg2[%c0_1, %c0_2] : memref<1x128xf32, #tpu.memory_space<vmem>>, vector<1x128xf32>
    %2 = vector.broadcast %1 : vector<1x128xf32> to vector<512x128xf32>
    %3 = arith.mulf %0, %2 : vector<512x128xf32>
    %c0_3 = arith.constant 0 : index
    %c0_4 = arith.constant 0 : index
    %4 = vector.load %arg3[%c0_3, %c0_4] : memref<1x128xf32, #tpu.memory_space<vmem>>, vector<1x128xf32>
    %5 = vector.broadcast %4 : vector<1x128xf32> to vector<512x128xf32>
    %6 = arith.addf %3, %5 : vector<512x128xf32>
    %cst = arith.constant 0.000000e+00 : f32
    %7 = vector.broadcast %cst : f32 to vector<512x128xf32>
    %8 = arith.cmpf oge, %6, %7 : vector<512x128xf32>
    %cst_5 = arith.constant 1.000000e-01 : f32
    %9 = vector.broadcast %cst_5 : f32 to vector<512x128xf32>
    %10 = arith.mulf %9, %6 : vector<512x128xf32>
    %11 = arith.select %8, %6, %10 : vector<512x128xi1>, vector<512x128xf32>
    %c0_6 = arith.constant 0 : index
    %c0_7 = arith.constant 0 : index
    %12 = vector.load %arg4[%c0_6, %c0_7] : memref<512x128xf32, #tpu.memory_space<vmem>>, vector<512x128xf32>
    tpu.vector_store %arg4[%c0_6, %c0_7], %11 {strides = array<i32>} : memref<512x128xf32, #tpu.memory_space<vmem>>, vector<512x128xf32>,
    return
  }
  func.func @transform_0(%arg0: i32) -> (i32, i32) {
    %c0_i32 = arith.constant 0 : i32
    %c0_i32_0 = arith.constant 0 : i32
    return %arg0, %c0_i32 : i32, i32
  }
  func.func @transform_1(%arg0: i32) -> (i32, i32) {
    %c0_i32 = arith.constant 0 : i32
    %c0_i32_0 = arith.constant 0 : i32
    %c0_i32_1 = arith.constant 0 : i32
    return %c0_i32, %c0_i32_0 : i32, i32
  }
  func.func @transform_2(%arg0: i32) -> (i32, i32) {
    %c0_i32 = arith.constant 0 : i32
    %c0_i32_0 = arith.constant 0 : i32
    %c0_i32_1 = arith.constant 0 : i32
    return %c0_i32, %c0_i32_0 : i32, i32
  }
  func.func @transform_3(%arg0: i32) -> (i32, i32) {
    %c0_i32 = arith.constant 0 : i32
    %c0_i32_0 = arith.constant 0 : i32
    return %arg0, %c0_i32 : i32, i32
  }
}

</mosaic_0001>

<llo_original>
// kernel: conv_block_forward.3
$region0: #{conv_block_forward.3}
  #allocation0 [shape = 'u32[]', space=smem, size = 0x4, offset = 0x4, fixed_abs, tag = 'smem constant byte address 0x4 - core index']
  #allocation1 [shape = 'u32[144,128]{1,0:T(1,128)}', space=vmem, size = 0x12000, scoped, tag = 'internal scratch']
  %s0 = inlined_call_operand.vmem [shape: f32[512,128], index: 0, kind: input, shape index: {}, may-alias: {0,3}]
  %s1 = inlined_call_operand.vmem [shape: f32[1,128], index: 1, kind: input, shape index: {}]
  %s2 = inlined_call_operand.vmem [shape: f32[1,128], index: 2, kind: input, shape index: {}]
  %s3 = inlined_call_operand.vmem [shape: f32[512,128], index: 3, kind: output, shape index: {}, may-alias: {0,3}]
  %s4 = sld [smem:[#allocation0]]
  $region22: #{conv_block_forward.3} parent=0
    _
  %s6 = ssub.s32 1, %s4
  %s7 = scalar_select 0, %s6, %s4
  // Predicated region
  $region2: #{conv_block_forward.3} parent=0 // pred_check
    _
  $region3: #{conv_block_forward.3} parent=0 // pred_check_branch
    %9 = sbr.rel (0) target = $region5
  $region4: #{conv_block_forward.3} parent=0 // pred_region
    _
  $region5: #{conv_block_forward.3} parent=0 // pred_fallthru
    _
  // Predicated region
  $region6: #{conv_block_forward.3} parent=0 // pred_check
    _
  $region7: #{conv_block_forward.3} parent=0 // pred_check_branch
    %11 = sbr.rel (0) target = $region9
  $region8: #{conv_block_forward.3} parent=0 // pred_region
    _
  $region9: #{conv_block_forward.3} parent=0 // pred_fallthru
    _
  // Predicated region
  $region10: #{conv_block_forward.3} parent=0 // pred_check
    _
  $region11: #{conv_block_forward.3} parent=0 // pred_check_branch
    %13 = sbr.rel (0) target = $region13
  $region12: #{conv_block_forward.3} parent=0 // pred_region
    _
  $region13: #{conv_block_forward.3} parent=0 // pred_fallthru
    _
  %v14 = vld [vmem:[%s0] sm:$0xff]
  %v15 = vld [vmem:[%s0 + $0x8] sm:$0xff]
  %v16 = vld [vmem:[%s0 + $0x10] sm:$0xff]
  %v17 = vld [vmem:[%s0 + $0x18] sm:$0xff]
  %v18 = vld [vmem:[%s0 + $0x20] sm:$0xff]
  %v19 = vld [vmem:[%s0 + $0x28] sm:$0xff]
  %v20 = vld [vmem:[%s0 + $0x30] sm:$0xff]
  %v21 = vld [vmem:[%s0 + $0x38] sm:$0xff]
  %v22 = vld [vmem:[%s0 + $0x40] sm:$0xff]
  %v23 = vld [vmem:[%s0 + $0x48] sm:$0xff]
  %v24 = vld [vmem:[%s0 + $0x50] sm:$0xff]
  %v25 = vld [vmem:[%s0 + $0x58] sm:$0xff]
  %v26 = vld [vmem:[%s0 + $0x60] sm:$0xff]
  %v27 = vld [vmem:[%s0 + $0x68] sm:$0xff]
  %v28 = vld [vmem:[%s0 + $0x70] sm:$0xff]
  %v29 = vld [vmem:[%s0 + $0x78] sm:$0xff]
  %v30 = vld [vmem:[%s0 + $0x80] sm:$0xff]
  %v31 = vld [vmem:[%s0 + $0x88] sm:$0xff]
  %v32 = vld [vmem:[%s0 + $0x90] sm:$0xff]
  %v33 = vld [vmem:[%s0 + $0x98] sm:$0xff]
  %v34 = vld [vmem:[%s0 + $0xa0] sm:$0xff]
  %v35 = vld [vmem:[%s0 + $0xa8] sm:$0xff]
  %v36 = vld [vmem:[%s0 + $0xb0] sm:$0xff]
  %v37 = vld [vmem:[%s0 + $0xb8] sm:$0xff]
  %v38 = vld [vmem:[%s0 + $0xc0] sm:$0xff]
  %v39 = vld [vmem:[%s0 + $0xc8] sm:$0xff]
  %v40 = vld [vmem:[%s0 + $0xd0] sm:$0xff]
  %v41 = vld [vmem:[%s0 + $0xd8] sm:$0xff]
  %v42 = vld [vmem:[%s0 + $0xe0] sm:$0xff]
  %v43 = vld [vmem:[%s0 + $0xe8] sm:$0xff]
  %v44 = vld [vmem:[%s0 + $0xf0] sm:$0xff]
  %v45 = vld [vmem:[%s0 + $0xf8] sm:$0xff]
  %v46 = vld [vmem:[%s0 + $0x100] sm:$0xff]
  %v47 = vld [vmem:[%s0 + $0x108] sm:$0xff]
  %v48 = vld [vmem:[%s0 + $0x110] sm:$0xff]
  %v49 = vld [vmem:[%s0 + $0x118] sm:$0xff]
  %v50 = vld [vmem:[%s0 + $0x120] sm:$0xff]
  %v51 = vld [vmem:[%s0 + $0x128] sm:$0xff]
  %v52 = vld [vmem:[%s0 + $0x130] sm:$0xff]
  %v53 = vld [vmem:[%s0 + $0x138] sm:$0xff]
  %v54 = vld [vmem:[%s0 + $0x140] sm:$0xff]
  %v55 = vld [vmem:[%s0 + $0x148] sm:$0xff]
  %v56 = vld [vmem:[%s0 + $0x150] sm:$0xff]
  %v57 = vld [vmem:[%s0 + $0x158] sm:$0xff]
  %v58 = vld [vmem:[%s0 + $0x160] sm:$0xff]
  %v59 = vld [vmem:[%s0 + $0x168] sm:$0xff]
  %v60 = vld [vmem:[%s0 + $0x170] sm:$0xff]
  %v61 = vld [vmem:[%s0 + $0x178] sm:$0xff]
  %v62 = vld [vmem:[%s0 + $0x180] sm:$0xff]
  %v63 = vld [vmem:[%s0 + $0x188] sm:$0xff]
  %v64 = vld [vmem:[%s0 + $0x190] sm:$0xff]
  %v65 = vld [vmem:[%s0 + $0x198] sm:$0xff]
  %v66 = vld [vmem:[%s0 + $0x1a0] sm:$0xff]
  %v67 = vld [vmem:[%s0 + $0x1a8] sm:$0xff]
  %v68 = vld [vmem:[%s0 + $0x1b0] sm:$0xff]
  %v69 = vld [vmem:[%s0 + $0x1b8] sm:$0xff]
  %v70 = vld [vmem:[%s0 + $0x1c0] sm:$0xff]
  %v71 = vld [vmem:[%s0 + $0x1c8] sm:$0xff]
  %v72 = vld [vmem:[%s0 + $0x1d0] sm:$0xff]
  %v73 = vld [vmem:[%s0 + $0x1d8] sm:$0xff]
  %v74 = vld [vmem:[%s0 + $0x1e0] sm:$0xff]
  %v75 = vld [vmem:[%s0 + $0x1e8] sm:$0xff]
  %v76 = vld [vmem:[%s0 + $0x1f0] sm:$0xff]
  %v77 = vld [vmem:[%s0 + $0x1f8] sm:$0xff]
  %v78 = vld [vmem:[%s1] sm:$0x1]
  %v80 = vlaneseq
  %v81 = vshrl.u32 %v80, 7
  %v82 = vsub.s32 0, %v81
  %v83 = vrot.slane %v78, %v82
  %v85 = vmul.f32 %v14, %v83
  %v86 = vmul.f32 %v15, %v83
  %v87 = vmul.f32 %v16, %v83
  %v88 = vmul.f32 %v17, %v83
  %v89 = vmul.f32 %v18, %v83
  %v90 = vmul.f32 %v19, %v83
  %v91 = vmul.f32 %v20, %v83
  %v92 = vmul.f32 %v21, %v83
  %v93 = vmul.f32 %v22, %v83
  %v94 = vmul.f32 %v23, %v83
  %v95 = vmul.f32 %v24, %v83
  %v96 = vmul.f32 %v25, %v83
  %v97 = vmul.f32 %v26, %v83
  %v98 = vmul.f32 %v27, %v83
  %v99 = vmul.f32 %v28, %v83
  %v100 = vmul.f32 %v29, %v83
  %v101 = vmul.f32 %v30, %v83
  %v102 = vmul.f32 %v31, %v83
  %v103 = vmul.f32 %v32, %v83
  %v104 = vmul.f32 %v33, %v83
  %v105 = vmul.f32 %v34, %v83
  %v106 = vmul.f32 %v35, %v83
  %v107 = vmul.f32 %v36, %v83
  %v108 = vmul.f32 %v37, %v83
  %v109 = vmul.f32 %v38, %v83
  %v110 = vmul.f32 %v39, %v83
  %v111 = vmul.f32 %v40, %v83
  %v112 = vmul.f32 %v41, %v83
  %v113 = vmul.f32 %v42, %v83
  %v114 = vmul.f32 %v43, %v83
  %v115 = vmul.f32 %v44, %v83
  %v116 = vmul.f32 %v45, %v83
  %v117 = vmul.f32 %v46, %v83
  %v118 = vmul.f32 %v47, %v83
  %v119 = vmul.f32 %v48, %v83
  %v120 = vmul.f32 %v49, %v83
  %v121 = vmul.f32 %v50, %v83
  %v122 = vmul.f32 %v51, %v83
  %v123 = vmul.f32 %v52, %v83
  %v124 = vmul.f32 %v53, %v83
  %v125 = vmul.f32 %v54, %v83
  %v126 = vmul.f32 %v55, %v83
  %v127 = vmul.f32 %v56, %v83
  %v128 = vmul.f32 %v57, %v83
  %v129 = vmul.f32 %v58, %v83
  %v130 = vmul.f32 %v59, %v83
  %v131 = vmul.f32 %v60, %v83
  %v132 = vmul.f32 %v61, %v83
  %v133 = vmul.f32 %v62, %v83
  %v134 = vmul.f32 %v63, %v83
  %v135 = vmul.f32 %v64, %v83
  %v136 = vmul.f32 %v65, %v83
  %v137 = vmul.f32 %v66, %v83
  %v138 = vmul.f32 %v67, %v83
  %v139 = vmul.f32 %v68, %v83
  %v140 = vmul.f32 %v69, %v83
  %v141 = vmul.f32 %v70, %v83
  %v142 = vmul.f32 %v71, %v83
  %v143 = vmul.f32 %v72, %v83
  %v144 = vmul.f32 %v73, %v83
  %v145 = vmul.f32 %v74, %v83
  %v146 = vmul.f32 %v75, %v83
  %v147 = vmul.f32 %v76, %v83
  %v148 = vmul.f32 %v77, %v83
  %v149 = vld [vmem:[%s2] sm:$0x1]
  %v151 = vlaneseq
  %v152 = vshrl.u32 %v151, 7
  %v153 = vsub.s32 0, %v152
  %v154 = vrot.slane %v149, %v153
  %v156 = vadd.f32 %v85, %v154
  %v157 = vadd.f32 %v86, %v154
  %v158 = vadd.f32 %v87, %v154
  %v159 = vadd.f32 %v88, %v154
  %v160 = vadd.f32 %v89, %v154
  %v161 = vadd.f32 %v90, %v154
  %v162 = vadd.f32 %v91, %v154
  %v163 = vadd.f32 %v92, %v154
  %v164 = vadd.f32 %v93, %v154
  %v165 = vadd.f32 %v94, %v154
  %v166 = vadd.f32 %v95, %v154
  %v167 = vadd.f32 %v96, %v154
  %v168 = vadd.f32 %v97, %v154
  %v169 = vadd.f32 %v98, %v154
  %v170 = vadd.f32 %v99, %v154
  %v171 = vadd.f32 %v100, %v154
  %v172 = vadd.f32 %v101, %v154
  %v173 = vadd.f32 %v102, %v154
  %v174 = vadd.f32 %v103, %v154
  %v175 = vadd.f32 %v104, %v154
  %v176 = vadd.f32 %v105, %v154
  %v177 = vadd.f32 %v106, %v154
  %v178 = vadd.f32 %v107, %v154
  %v179 = vadd.f32 %v108, %v154
  %v180 = vadd.f32 %v109, %v154
  %v181 = vadd.f32 %v110, %v154
  %v182 = vadd.f32 %v111, %v154
  %v183 = vadd.f32 %v112, %v154
  %v184 = vadd.f32 %v113, %v154
  %v185 = vadd.f32 %v114, %v154
  %v186 = vadd.f32 %v115, %v154
  %v187 = vadd.f32 %v116, %v154
  %v188 = vadd.f32 %v117, %v154
  %v189 = vadd.f32 %v118, %v154
  %v190 = vadd.f32 %v119, %v154
  %v191 = vadd.f32 %v120, %v154
  %v192 = vadd.f32 %v121, %v154
  %v193 = vadd.f32 %v122, %v154
  %v194 = vadd.f32 %v123, %v154
  %v195 = vadd.f32 %v124, %v154
  %v196 = vadd.f32 %v125, %v154
  %v197 = vadd.f32 %v126, %v154
  %v198 = vadd.f32 %v127, %v154
  %v199 = vadd.f32 %v128, %v154
  %v200 = vadd.f32 %v129, %v154
  %v201 = vadd.f32 %v130, %v154
  %v202 = vadd.f32 %v131, %v154
  %v203 = vadd.f32 %v132, %v154
  %v204 = vadd.f32 %v133, %v154
  %v205 = vadd.f32 %v134, %v154
  %v206 = vadd.f32 %v135, %v154
  %v207 = vadd.f32 %v136, %v154
  %v208 = vadd.f32 %v137, %v154
  %v209 = vadd.f32 %v138, %v154
  %v210 = vadd.f32 %v139, %v154
  %v211 = vadd.f32 %v140, %v154
  %v212 = vadd.f32 %v141, %v154
  %v213 = vadd.f32 %v142, %v154
  %v214 = vadd.f32 %v143, %v154
  %v215 = vadd.f32 %v144, %v154
  %v216 = vadd.f32 %v145, %v154
  %v217 = vadd.f32 %v146, %v154
  %v218 = vadd.f32 %v147, %v154
  %v219 = vadd.f32 %v148, %v154
  %vm220 = vcmp.ge.f32.partialorder %v156, 0.0
  %vm221 = vcmp.ge.f32.partialorder %v157, 0.0
  %vm222 = vcmp.ge.f32.partialorder %v158, 0.0
  %vm223 = vcmp.ge.f32.partialorder %v159, 0.0
  %vm224 = vcmp.ge.f32.partialorder %v160, 0.0
  %vm225 = vcmp.ge.f32.partialorder %v161, 0.0
  %vm226 = vcmp.ge.f32.partialorder %v162, 0.0
  %vm227 = vcmp.ge.f32.partialorder %v163, 0.0
  %vm228 = vcmp.ge.f32.partialorder %v164, 0.0
  %vm229 = vcmp.ge.f32.partialorder %v165, 0.0
  %vm230 = vcmp.ge.f32.partialorder %v166, 0.0
  %vm231 = vcmp.ge.f32.partialorder %v167, 0.0
  %vm232 = vcmp.ge.f32.partialorder %v168, 0.0
  %vm233 = vcmp.ge.f32.partialorder %v169, 0.0
  %vm234 = vcmp.ge.f32.partialorder %v170, 0.0
  %vm235 = vcmp.ge.f32.partialorder %v171, 0.0
  %vm236 = vcmp.ge.f32.partialorder %v172, 0.0
  %vm237 = vcmp.ge.f32.partialorder %v173, 0.0
  %vm238 = vcmp.ge.f32.partialorder %v174, 0.0
  %vm239 = vcmp.ge.f32.partialorder %v175, 0.0
  %vm240 = vcmp.ge.f32.partialorder %v176, 0.0
  %vm241 = vcmp.ge.f32.partialorder %v177, 0.0
  %vm242 = vcmp.ge.f32.partialorder %v178, 0.0
  %vm243 = vcmp.ge.f32.partialorder %v179, 0.0
  %vm244 = vcmp.ge.f32.partialorder %v180, 0.0
  %vm245 = vcmp.ge.f32.partialorder %v181, 0.0
  %vm246 = vcmp.ge.f32.partialorder %v182, 0.0
  %vm247 = vcmp.ge.f32.partialorder %v183, 0.0
  %vm248 = vcmp.ge.f32.partialorder %v184, 0.0
  %vm249 = vcmp.ge.f32.partialorder %v185, 0.0
  %vm250 = vcmp.ge.f32.partialorder %v186, 0.0
  %vm251 = vcmp.ge.f32.partialorder %v187, 0.0
  %vm252 = vcmp.ge.f32.partialorder %v188, 0.0
  %vm253 = vcmp.ge.f32.partialorder %v189, 0.0
  %vm254 = vcmp.ge.f32.partialorder %v190, 0.0
  %vm255 = vcmp.ge.f32.partialorder %v191, 0.0
  %vm256 = vcmp.ge.f32.partialorder %v192, 0.0
  %vm257 = vcmp.ge.f32.partialorder %v193, 0.0
  %vm258 = vcmp.ge.f32.partialorder %v194, 0.0
  %vm259 = vcmp.ge.f32.partialorder %v195, 0.0
  %vm260 = vcmp.ge.f32.partialorder %v196, 0.0
  %vm261 = vcmp.ge.f32.partialorder %v197, 0.0
  %vm262 = vcmp.ge.f32.partialorder %v198, 0.0
  %vm263 = vcmp.ge.f32.partialorder %v199, 0.0
  %vm264 = vcmp.ge.f32.partialorder %v200, 0.0
  %vm265 = vcmp.ge.f32.partialorder %v201, 0.0
  %vm266 = vcmp.ge.f32.partialorder %v202, 0.0
  %vm267 = vcmp.ge.f32.partialorder %v203, 0.0
  %vm268 = vcmp.ge.f32.partialorder %v204, 0.0
  %vm269 = vcmp.ge.f32.partialorder %v205, 0.0
  %vm270 = vcmp.ge.f32.partialorder %v206, 0.0
  %vm271 = vcmp.ge.f32.partialorder %v207, 0.0
  %vm272 = vcmp.ge.f32.partialorder %v208, 0.0
  %vm273 = vcmp.ge.f32.partialorder %v209, 0.0
  %vm274 = vcmp.ge.f32.partialorder %v210, 0.0
  %vm275 = vcmp.ge.f32.partialorder %v211, 0.0
  %vm276 = vcmp.ge.f32.partialorder %v212, 0.0
  %vm277 = vcmp.ge.f32.partialorder %v213, 0.0
  %vm278 = vcmp.ge.f32.partialorder %v214, 0.0
  %vm279 = vcmp.ge.f32.partialorder %v215, 0.0
  %vm280 = vcmp.ge.f32.partialorder %v216, 0.0
  %vm281 = vcmp.ge.f32.partialorder %v217, 0.0
  %vm282 = vcmp.ge.f32.partialorder %v218, 0.0
  %vm283 = vcmp.ge.f32.partialorder %v219, 0.0
  %v284 = vmul.f32 %v156, 0.1
  %v285 = vmul.f32 %v157, 0.1
  %v286 = vmul.f32 %v158, 0.1
  %v287 = vmul.f32 %v159, 0.1
  %v288 = vmul.f32 %v160, 0.1
  %v289 = vmul.f32 %v161, 0.1
  %v290 = vmul.f32 %v162, 0.1
  %v291 = vmul.f32 %v163, 0.1
  %v292 = vmul.f32 %v164, 0.1
  %v293 = vmul.f32 %v165, 0.1
  %v294 = vmul.f32 %v166, 0.1
  %v295 = vmul.f32 %v167, 0.1
  %v296 = vmul.f32 %v168, 0.1
  %v297 = vmul.f32 %v169, 0.1
  %v298 = vmul.f32 %v170, 0.1
  %v299 = vmul.f32 %v171, 0.1
  %v300 = vmul.f32 %v172, 0.1
  %v301 = vmul.f32 %v173, 0.1
  %v302 = vmul.f32 %v174, 0.1
  %v303 = vmul.f32 %v175, 0.1
  %v304 = vmul.f32 %v176, 0.1
  %v305 = vmul.f32 %v177, 0.1
  %v306 = vmul.f32 %v178, 0.1
  %v307 = vmul.f32 %v179, 0.1
  %v308 = vmul.f32 %v180, 0.1
  %v309 = vmul.f32 %v181, 0.1
  %v310 = vmul.f32 %v182, 0.1
  %v311 = vmul.f32 %v183, 0.1
  %v312 = vmul.f32 %v184, 0.1
  %v313 = vmul.f32 %v185, 0.1
  %v314 = vmul.f32 %v186, 0.1
  %v315 = vmul.f32 %v187, 0.1
  %v316 = vmul.f32 %v188, 0.1
  %v317 = vmul.f32 %v189, 0.1
  %v318 = vmul.f32 %v190, 0.1
  %v319 = vmul.f32 %v191, 0.1
  %v320 = vmul.f32 %v192, 0.1
  %v321 = vmul.f32 %v193, 0.1
  %v322 = vmul.f32 %v194, 0.1
  %v323 = vmul.f32 %v195, 0.1
  %v324 = vmul.f32 %v196, 0.1
  %v325 = vmul.f32 %v197, 0.1
  %v326 = vmul.f32 %v198, 0.1
  %v327 = vmul.f32 %v199, 0.1
  %v328 = vmul.f32 %v200, 0.1
  %v329 = vmul.f32 %v201, 0.1
  %v330 = vmul.f32 %v202, 0.1
  %v331 = vmul.f32 %v203, 0.1
  %v332 = vmul.f32 %v204, 0.1
  %v333 = vmul.f32 %v205, 0.1
  %v334 = vmul.f32 %v206, 0.1
  %v335 = vmul.f32 %v207, 0.1
  %v336 = vmul.f32 %v208, 0.1
  %v337 = vmul.f32 %v209, 0.1
  %v338 = vmul.f32 %v210, 0.1
  %v339 = vmul.f32 %v211, 0.1
  %v340 = vmul.f32 %v212, 0.1
  %v341 = vmul.f32 %v213, 0.1
  %v342 = vmul.f32 %v214, 0.1
  %v343 = vmul.f32 %v215, 0.1
  %v344 = vmul.f32 %v216, 0.1
  %v345 = vmul.f32 %v217, 0.1
  %v346 = vmul.f32 %v218, 0.1
  %v347 = vmul.f32 %v219, 0.1
  %v348 = vsel %vm220, %v156, %v284
  %v349 = vsel %vm221, %v157, %v285
  %v350 = vsel %vm222, %v158, %v286
  %v351 = vsel %vm223, %v159, %v287
  %v352 = vsel %vm224, %v160, %v288
  %v353 = vsel %vm225, %v161, %v289
  %v354 = vsel %vm226, %v162, %v290
  %v355 = vsel %vm227, %v163, %v291
  %v356 = vsel %vm228, %v164, %v292
  %v357 = vsel %vm229, %v165, %v293
  %v358 = vsel %vm230, %v166, %v294
  %v359 = vsel %vm231, %v167, %v295
  %v360 = vsel %vm232, %v168, %v296
  %v361 = vsel %vm233, %v169, %v297
  %v362 = vsel %vm234, %v170, %v298
  %v363 = vsel %vm235, %v171, %v299
  %v364 = vsel %vm236, %v172, %v300
  %v365 = vsel %vm237, %v173, %v301
  %v366 = vsel %vm238, %v174, %v302
  %v367 = vsel %vm239, %v175, %v303
  %v368 = vsel %vm240, %v176, %v304
  %v369 = vsel %vm241, %v177, %v305
  %v370 = vsel %vm242, %v178, %v306
  %v371 = vsel %vm243, %v179, %v307
  %v372 = vsel %vm244, %v180, %v308
  %v373 = vsel %vm245, %v181, %v309
  %v374 = vsel %vm246, %v182, %v310
  %v375 = vsel %vm247, %v183, %v311
  %v376 = vsel %vm248, %v184, %v312
  %v377 = vsel %vm249, %v185, %v313
  %v378 = vsel %vm250, %v186, %v314
  %v379 = vsel %vm251, %v187, %v315
  %v380 = vsel %vm252, %v188, %v316
  %v381 = vsel %vm253, %v189, %v317
  %v382 = vsel %vm254, %v190, %v318
  %v383 = vsel %vm255, %v191, %v319
  %v384 = vsel %vm256, %v192, %v320
  %v385 = vsel %vm257, %v193, %v321
  %v386 = vsel %vm258, %v194, %v322
  %v387 = vsel %vm259, %v195, %v323
  %v388 = vsel %vm260, %v196, %v324
  %v389 = vsel %vm261, %v197, %v325
  %v390 = vsel %vm262, %v198, %v326
  %v391 = vsel %vm263, %v199, %v327
  %v392 = vsel %vm264, %v200, %v328
  %v393 = vsel %vm265, %v201, %v329
  %v394 = vsel %vm266, %v202, %v330
  %v395 = vsel %vm267, %v203, %v331
  %v396 = vsel %vm268, %v204, %v332
  %v397 = vsel %vm269, %v205, %v333
  %v398 = vsel %vm270, %v206, %v334
  %v399 = vsel %vm271, %v207, %v335
  %v400 = vsel %vm272, %v208, %v336
  %v401 = vsel %vm273, %v209, %v337
  %v402 = vsel %vm274, %v210, %v338
  %v403 = vsel %vm275, %v211, %v339
  %v404 = vsel %vm276, %v212, %v340
  %v405 = vsel %vm277, %v213, %v341
  %v406 = vsel %vm278, %v214, %v342
  %v407 = vsel %vm279, %v215, %v343
  %v408 = vsel %vm280, %v216, %v344
  %v409 = vsel %vm281, %v217, %v345
  %v410 = vsel %vm282, %v218, %v346
  %v411 = vsel %vm283, %v219, %v347
  %412 = vst [vmem:[%s3] sm:$0xff] %v348
  %413 = vst [vmem:[%s3 + $0x8] sm:$0xff] %v349
  %414 = vst [vmem:[%s3 + $0x10] sm:$0xff] %v350
  %415 = vst [vmem:[%s3 + $0x18] sm:$0xff] %v351
  %416 = vst [vmem:[%s3 + $0x20] sm:$0xff] %v352
  %417 = vst [vmem:[%s3 + $0x28] sm:$0xff] %v353
  %418 = vst [vmem:[%s3 + $0x30] sm:$0xff] %v354
  %419 = vst [vmem:[%s3 + $0x38] sm:$0xff] %v355
  %420 = vst [vmem:[%s3 + $0x40] sm:$0xff] %v356
  %421 = vst [vmem:[%s3 + $0x48] sm:$0xff] %v357
  %422 = vst [vmem:[%s3 + $0x50] sm:$0xff] %v358
  %423 = vst [vmem:[%s3 + $0x58] sm:$0xff] %v359
  %424 = vst [vmem:[%s3 + $0x60] sm:$0xff] %v360
  %425 = vst [vmem:[%s3 + $0x68] sm:$0xff] %v361
  %426 = vst [vmem:[%s3 + $0x70] sm:$0xff] %v362
  %427 = vst [vmem:[%s3 + $0x78] sm:$0xff] %v363
  %428 = vst [vmem:[%s3 + $0x80] sm:$0xff] %v364
  %429 = vst [vmem:[%s3 + $0x88] sm:$0xff] %v365
  %430 = vst [vmem:[%s3 + $0x90] sm:$0xff] %v366
  %431 = vst [vmem:[%s3 + $0x98] sm:$0xff] %v367
  %432 = vst [vmem:[%s3 + $0xa0] sm:$0xff] %v368
  %433 = vst [vmem:[%s3 + $0xa8] sm:$0xff] %v369
  %434 = vst [vmem:[%s3 + $0xb0] sm:$0xff] %v370
  %435 = vst [vmem:[%s3 + $0xb8] sm:$0xff] %v371
  %436 = vst [vmem:[%s3 + $0xc0] sm:$0xff] %v372
  %437 = vst [vmem:[%s3 + $0xc8] sm:$0xff] %v373
  %438 = vst [vmem:[%s3 + $0xd0] sm:$0xff] %v374
  %439 = vst [vmem:[%s3 + $0xd8] sm:$0xff] %v375
  %440 = vst [vmem:[%s3 + $0xe0] sm:$0xff] %v376
  %441 = vst [vmem:[%s3 + $0xe8] sm:$0xff] %v377
  %442 = vst [vmem:[%s3 + $0xf0] sm:$0xff] %v378
  %443 = vst [vmem:[%s3 + $0xf8] sm:$0xff] %v379
  %444 = vst [vmem:[%s3 + $0x100] sm:$0xff] %v380
  %445 = vst [vmem:[%s3 + $0x108] sm:$0xff] %v381
  %446 = vst [vmem:[%s3 + $0x110] sm:$0xff] %v382
  %447 = vst [vmem:[%s3 + $0x118] sm:$0xff] %v383
  %448 = vst [vmem:[%s3 + $0x120] sm:$0xff] %v384
  %449 = vst [vmem:[%s3 + $0x128] sm:$0xff] %v385
  %450 = vst [vmem:[%s3 + $0x130] sm:$0xff] %v386
  %451 = vst [vmem:[%s3 + $0x138] sm:$0xff] %v387
  %452 = vst [vmem:[%s3 + $0x140] sm:$0xff] %v388
  %453 = vst [vmem:[%s3 + $0x148] sm:$0xff] %v389
  %454 = vst [vmem:[%s3 + $0x150] sm:$0xff] %v390
  %455 = vst [vmem:[%s3 + $0x158] sm:$0xff] %v391
  %456 = vst [vmem:[%s3 + $0x160] sm:$0xff] %v392
  %457 = vst [vmem:[%s3 + $0x168] sm:$0xff] %v393
  %458 = vst [vmem:[%s3 + $0x170] sm:$0xff] %v394
  %459 = vst [vmem:[%s3 + $0x178] sm:$0xff] %v395
  %460 = vst [vmem:[%s3 + $0x180] sm:$0xff] %v396
  %461 = vst [vmem:[%s3 + $0x188] sm:$0xff] %v397
  %462 = vst [vmem:[%s3 + $0x190] sm:$0xff] %v398
  %463 = vst [vmem:[%s3 + $0x198] sm:$0xff] %v399
  %464 = vst [vmem:[%s3 + $0x1a0] sm:$0xff] %v400
  %465 = vst [vmem:[%s3 + $0x1a8] sm:$0xff] %v401
  %466 = vst [vmem:[%s3 + $0x1b0] sm:$0xff] %v402
  %467 = vst [vmem:[%s3 + $0x1b8] sm:$0xff] %v403
  %468 = vst [vmem:[%s3 + $0x1c0] sm:$0xff] %v404
  %469 = vst [vmem:[%s3 + $0x1c8] sm:$0xff] %v405
  %470 = vst [vmem:[%s3 + $0x1d0] sm:$0xff] %v406
  %471 = vst [vmem:[%s3 + $0x1d8] sm:$0xff] %v407
  %472 = vst [vmem:[%s3 + $0x1e0] sm:$0xff] %v408
  %473 = vst [vmem:[%s3 + $0x1e8] sm:$0xff] %v409
  %474 = vst [vmem:[%s3 + $0x1f0] sm:$0xff] %v410
  %475 = vst [vmem:[%s3 + $0x1f8] sm:$0xff] %v411
  // Predicated region
  $region14: #{conv_block_forward.3} parent=0 // pred_check
    _
  $region15: #{conv_block_forward.3} parent=0 // pred_check_branch
    %477 = sbr.rel (0) target = $region17
  $region16: #{conv_block_forward.3} parent=0 // pred_region
    _
  $region17: #{conv_block_forward.3} parent=0 // pred_fallthru
    _
  // Predicated region
  $region18: #{conv_block_forward.3} parent=0 // pred_check
    _
  $region19: #{conv_block_forward.3} parent=0 // pred_check_branch
    %479 = sbr.rel (0) target = $region21
  $region20: #{conv_block_forward.3} parent=0 // pred_region
    _
  $region21: #{conv_block_forward.3} parent=0 // pred_fallthru
    _

// kernel: conv_block_forward.2
$region0: #{conv_block_forward.2}
  #allocation0 [shape = 'u32[]', space=smem, size = 0x4, offset = 0x4, fixed_abs, tag = 'smem constant byte address 0x4 - core index']
  #allocation1 [shape = 'u32[144,128]{1,0:T(1,128)}', space=vmem, size = 0x12000, scoped, tag = 'internal scratch']
  #allocation2 [shape = 'f32[512,128]{1,0:T(8,128)}', space=vmem, size = 0x40000, scoped, tag = 'scratch operand']
  %s0 = inlined_call_operand.vmem [shape: f32[512,128], index: 0, kind: input, shape index: {}]
  %s1 = inlined_call_operand.vmem [shape: f32[128,128], index: 1, kind: input, shape index: {}]
  %s2 = inlined_call_operand.vmem [shape: f32[512,128], index: 2, kind: output, shape index: {0}]
  %s3 = inlined_call_operand.vmem [shape: f32[1,8,128], index: 3, kind: output, shape index: {1}]
  %s4 = inlined_call_operand.vmem [shape: f32[1,8,128], index: 4, kind: output, shape index: {2}]
  %5 = xla_tuple %s2, %s3, %s4
  %s6 = sld [smem:[#allocation0]]
  $region42: #{conv_block_forward.2} parent=0
    _
  %s8 = ssub.s32 1, %s6
  %s9 = scalar_select 0, %s8, %s6
  // Predicated region
  $region2: #{conv_block_forward.2} parent=0 // pred_check
    _
  $region3: #{conv_block_forward.2} parent=0 // pred_check_branch
    %11 = sbr.rel (0) target = $region5
  $region4: #{conv_block_forward.2} parent=0 // pred_region
    _
  $region5: #{conv_block_forward.2} parent=0 // pred_fallthru
    _
  // Predicated region
  $region6: #{conv_block_forward.2} parent=0 // pred_check
    _
  $region7: #{conv_block_forward.2} parent=0 // pred_check_branch
    %13 = sbr.rel (0) target = $region9
  $region8: #{conv_block_forward.2} parent=0 // pred_region
    _
  $region9: #{conv_block_forward.2} parent=0 // pred_fallthru
    _
  %p14 = scmp.eq.s32.totalorder 0, 0
  // Predicated region
  $region10: #{conv_block_forward.2} parent=0 // pred_check
    %p15 = pneg %p14
  $region11: #{conv_block_forward.2} parent=0 // pred_check_branch
    %17 = sbr.rel (%p15) target = $region13
  $region12: #{conv_block_forward.2} parent=0 // pred_region
    %18 = vst [vmem:[#allocation2] sm:$0xff] 0.0
    %19 = vst [vmem:[#allocation2 + $0x8] sm:$0xff] 0.0
    %20 = vst [vmem:[#allocation2 + $0x10] sm:$0xff] 0.0
    %21 = vst [vmem:[#allocation2 + $0x18] sm:$0xff] 0.0
    %22 = vst [vmem:[#allocation2 + $0x20] sm:$0xff] 0.0
    %23 = vst [vmem:[#allocation2 + $0x28] sm:$0xff] 0.0
    %24 = vst [vmem:[#allocation2 + $0x30] sm:$0xff] 0.0
    %25 = vst [vmem:[#allocation2 + $0x38] sm:$0xff] 0.0
    %26 = vst [vmem:[#allocation2 + $0x40] sm:$0xff] 0.0
    %27 = vst [vmem:[#allocation2 + $0x48] sm:$0xff] 0.0
    %28 = vst [vmem:[#allocation2 + $0x50] sm:$0xff] 0.0
    %29 = vst [vmem:[#allocation2 + $0x58] sm:$0xff] 0.0
    %30 = vst [vmem:[#allocation2 + $0x60] sm:$0xff] 0.0
    %31 = vst [vmem:[#allocation2 + $0x68] sm:$0xff] 0.0
    %32 = vst [vmem:[#allocation2 + $0x70] sm:$0xff] 0.0
    %33 = vst [vmem:[#allocation2 + $0x78] sm:$0xff] 0.0
    %34 = vst [vmem:[#allocation2 + $0x80] sm:$0xff] 0.0
    %35 = vst [vmem:[#allocation2 + $0x88] sm:$0xff] 0.0
    %36 = vst [vmem:[#allocation2 + $0x90] sm:$0xff] 0.0
    %37 = vst [vmem:[#allocation2 + $0x98] sm:$0xff] 0.0
    %38 = vst [vmem:[#allocation2 + $0xa0] sm:$0xff] 0.0
    %39 = vst [vmem:[#allocation2 + $0xa8] sm:$0xff] 0.0
    %40 = vst [vmem:[#allocation2 + $0xb0] sm:$0xff] 0.0
    %41 = vst [vmem:[#allocation2 + $0xb8] sm:$0xff] 0.0
    %42 = vst [vmem:[#allocation2 + $0xc0] sm:$0xff] 0.0
    %43 = vst [vmem:[#allocation2 + $0xc8] sm:$0xff] 0.0
    %44 = vst [vmem:[#allocation2 + $0xd0] sm:$0xff] 0.0
    %45 = vst [vmem:[#allocation2 + $0xd8] sm:$0xff] 0.0
    %46 = vst [vmem:[#allocation2 + $0xe0] sm:$0xff] 0.0
    %47 = vst [vmem:[#allocation2 + $0xe8] sm:$0xff] 0.0
    %48 = vst [vmem:[#allocation2 + $0xf0] sm:$0xff] 0.0
    %49 = vst [vmem:[#allocation2 + $0xf8] sm:$0xff] 0.0
    %50 = vst [vmem:[#allocation2 + $0x100] sm:$0xff] 0.0
    %51 = vst [vmem:[#allocation2 + $0x108] sm:$0xff] 0.0
    %52 = vst [vmem:[#allocation2 + $0x110] sm:$0xff] 0.0
    %53 = vst [vmem:[#allocation2 + $0x118] sm:$0xff] 0.0
    %54 = vst [vmem:[#allocation2 + $0x120] sm:$0xff] 0.0
    %55 = vst [vmem:[#allocation2 + $0x128] sm:$0xff] 0.0
    %56 = vst [vmem:[#allocation2 + $0x130] sm:$0xff] 0.0
    %57 = vst [vmem:[#allocation2 + $0x138] sm:$0xff] 0.0
    %58 = vst [vmem:[#allocation2 + $0x140] sm:$0xff] 0.0
    %59 = vst [vmem:[#allocation2 + $0x148] sm:$0xff] 0.0
    %60 = vst [vmem:[#allocation2 + $0x150] sm:$0xff] 0.0
    %61 = vst [vmem:[#allocation2 + $0x158] sm:$0xff] 0.0
    %62 = vst [vmem:[#allocation2 + $0x160] sm:$0xff] 0.0
    %63 = vst [vmem:[#allocation2 + $0x168] sm:$0xff] 0.0
    %64 = vst [vmem:[#allocation2 + $0x170] sm:$0xff] 0.0
    %65 = vst [vmem:[#allocation2 + $0x178] sm:$0xff] 0.0
    %66 = vst [vmem:[#allocation2 + $0x180] sm:$0xff] 0.0
    %67 = vst [vmem:[#allocation2 + $0x188] sm:$0xff] 0.0
    %68 = vst [vmem:[#allocation2 + $0x190] sm:$0xff] 0.0
    %69 = vst [vmem:[#allocation2 + $0x198] sm:$0xff] 0.0
    %70 = vst [vmem:[#allocation2 + $0x1a0] sm:$0xff] 0.0
    %71 = vst [vmem:[#allocation2 + $0x1a8] sm:$0xff] 0.0
    %72 = vst [vmem:[#allocation2 + $0x1b0] sm:$0xff] 0.0
    %73 = vst [vmem:[#allocation2 + $0x1b8] sm:$0xff] 0.0
    %74 = vst [vmem:[#allocation2 + $0x1c0] sm:$0xff] 0.0
    %75 = vst [vmem:[#allocation2 + $0x1c8] sm:$0xff] 0.0
    %76 = vst [vmem:[#allocation2 + $0x1d0] sm:$0xff] 0.0
    %77 = vst [vmem:[#allocation2 + $0x1d8] sm:$0xff] 0.0
    %78 = vst [vmem:[#allocation2 + $0x1e0] sm:$0xff] 0.0
    %79 = vst [vmem:[#allocation2 + $0x1e8] sm:$0xff] 0.0
    %80 = vst [vmem:[#allocation2 + $0x1f0] sm:$0xff] 0.0
    %81 = vst [vmem:[#allocation2 + $0x1f8] sm:$0xff] 0.0
  $region13: #{conv_block_forward.2} parent=0 // pred_fallthru
    _
  %v82 = vld [vmem:[#allocation2] sm:$0xff]
  %v83 = vld [vmem:[#allocation2 + $0x8] sm:$0xff]
  %v84 = vld [vmem:[#allocation2 + $0x10] sm:$0xff]
  %v85 = vld [vmem:[#allocation2 + $0x18] sm:$0xff]
  %v86 = vld [vmem:[#allocation2 + $0x20] sm:$0xff]
  %v87 = vld [vmem:[#allocation2 + $0x28] sm:$0xff]
  %v88 = vld [vmem:[#allocation2 + $0x30] sm:$0xff]
  %v89 = vld [vmem:[#allocation2 + $0x38] sm:$0xff]
  %v90 = vld [vmem:[#allocation2 + $0x40] sm:$0xff]
  %v91 = vld [vmem:[#allocation2 + $0x48] sm:$0xff]
  %v92 = vld [vmem:[#allocation2 + $0x50] sm:$0xff]
  %v93 = vld [vmem:[#allocation2 + $0x58] sm:$0xff]
  %v94 = vld [vmem:[#allocation2 + $0x60] sm:$0xff]
  %v95 = vld [vmem:[#allocation2 + $0x68] sm:$0xff]
  %v96 = vld [vmem:[#allocation2 + $0x70] sm:$0xff]
  %v97 = vld [vmem:[#allocation2 + $0x78] sm:$0xff]
  %v98 = vld [vmem:[#allocation2 + $0x80] sm:$0xff]
  %v99 = vld [vmem:[#allocation2 + $0x88] sm:$0xff]
  %v100 = vld [vmem:[#allocation2 + $0x90] sm:$0xff]
  %v101 = vld [vmem:[#allocation2 + $0x98] sm:$0xff]
  %v102 = vld [vmem:[#allocation2 + $0xa0] sm:$0xff]
  %v103 = vld [vmem:[#allocation2 + $0xa8] sm:$0xff]
  %v104 = vld [vmem:[#allocation2 + $0xb0] sm:$0xff]
  %v105 = vld [vmem:[#allocation2 + $0xb8] sm:$0xff]
  %v106 = vld [vmem:[#allocation2 + $0xc0] sm:$0xff]
  %v107 = vld [vmem:[#allocation2 + $0xc8] sm:$0xff]
  %v108 = vld [vmem:[#allocation2 + $0xd0] sm:$0xff]
  %v109 = vld [vmem:[#allocation2 + $0xd8] sm:$0xff]
  %v110 = vld [vmem:[#allocation2 + $0xe0] sm:$0xff]
  %v111 = vld [vmem:[#allocation2 + $0xe8] sm:$0xff]
  %v112 = vld [vmem:[#allocation2 + $0xf0] sm:$0xff]
  %v113 = vld [vmem:[#allocation2 + $0xf8] sm:$0xff]
  %v114 = vld [vmem:[#allocation2 + $0x100] sm:$0xff]
  %v115 = vld [vmem:[#allocation2 + $0x108] sm:$0xff]
  %v116 = vld [vmem:[#allocation2 + $0x110] sm:$0xff]
  %v117 = vld [vmem:[#allocation2 + $0x118] sm:$0xff]
  %v118 = vld [vmem:[#allocation2 + $0x120] sm:$0xff]
  %v119 = vld [vmem:[#allocation2 + $0x128] sm:$0xff]
  %v120 = vld [vmem:[#allocation2 + $0x130] sm:$0xff]
  %v121 = vld [vmem:[#allocation2 + $0x138] sm:$0xff]
  %v122 = vld [vmem:[#allocation2 + $0x140] sm:$0xff]
  %v123 = vld [vmem:[#allocation2 + $0x148] sm:$0xff]
  %v124 = vld [vmem:[#allocation2 + $0x150] sm:$0xff]
  %v125 = vld [vmem:[#allocation2 + $0x158] sm:$0xff]
  %v126 = vld [vmem:[#allocation2 + $0x160] sm:$0xff]
  %v127 = vld [vmem:[#allocation2 + $0x168] sm:$0xff]
  %v128 = vld [vmem:[#allocation2 + $0x170] sm:$0xff]
  %v129 = vld [vmem:[#allocation2 + $0x178] sm:$0xff]
  %v130 = vld [vmem:[#allocation2 + $0x180] sm:$0xff]
  %v131 = vld [vmem:[#allocation2 + $0x188] sm:$0xff]
  %v132 = vld [vmem:[#allocation2 + $0x190] sm:$0xff]
  %v133 = vld [vmem:[#allocation2 + $0x198] sm:$0xff]
  %v134 = vld [vmem:[#allocation2 + $0x1a0] sm:$0xff]
  %v135 = vld [vmem:[#allocation2 + $0x1a8] sm:$0xff]
  %v136 = vld [vmem:[#allocation2 + $0x1b0] sm:$0xff]
  %v137 = vld [vmem:[#allocation2 + $0x1b8] sm:$0xff]
  %v138 = vld [vmem:[#allocation2 + $0x1c0] sm:$0xff]
  %v139 = vld [vmem:[#allocation2 + $0x1c8] sm:$0xff]
  %v140 = vld [vmem:[#allocation2 + $0x1d0] sm:$0xff]
  %v141 = vld [vmem:[#allocation2 + $0x1d8] sm:$0xff]
  %v142 = vld [vmem:[#allocation2 + $0x1e0] sm:$0xff]
  %v143 = vld [vmem:[#allocation2 + $0x1e8] sm:$0xff]
  %v144 = vld [vmem:[#allocation2 + $0x1f0] sm:$0xff]
  %v145 = vld [vmem:[#allocation2 + $0x1f8] sm:$0xff]
  %v146 = vld [vmem:[%s0] sm:$0xff]
  %v147 = vld [vmem:[%s0 + $0x8] sm:$0xff]
  %v148 = vld [vmem:[%s0 + $0x10] sm:$0xff]
  %v149 = vld [vmem:[%s0 + $0x18] sm:$0xff]
  %v150 = vld [vmem:[%s0 + $0x20] sm:$0xff]
  %v151 = vld [vmem:[%s0 + $0x28] sm:$0xff]
  %v152 = vld [vmem:[%s0 + $0x30] sm:$0xff]
  %v153 = vld [vmem:[%s0 + $0x38] sm:$0xff]
  %v154 = vld [vmem:[%s0 + $0x40] sm:$0xff]
  %v155 = vld [vmem:[%s0 + $0x48] sm:$0xff]
  %v156 = vld [vmem:[%s0 + $0x50] sm:$0xff]
  %v157 = vld [vmem:[%s0 + $0x58] sm:$0xff]
  %v158 = vld [vmem:[%s0 + $0x60] sm:$0xff]
  %v159 = vld [vmem:[%s0 + $0x68] sm:$0xff]
  %v160 = vld [vmem:[%s0 + $0x70] sm:$0xff]
  %v161 = vld [vmem:[%s0 + $0x78] sm:$0xff]
  %v162 = vld [vmem:[%s0 + $0x80] sm:$0xff]
  %v163 = vld [vmem:[%s0 + $0x88] sm:$0xff]
  %v164 = vld [vmem:[%s0 + $0x90] sm:$0xff]
  %v165 = vld [vmem:[%s0 + $0x98] sm:$0xff]
  %v166 = vld [vmem:[%s0 + $0xa0] sm:$0xff]
  %v167 = vld [vmem:[%s0 + $0xa8] sm:$0xff]
  %v168 = vld [vmem:[%s0 + $0xb0] sm:$0xff]
  %v169 = vld [vmem:[%s0 + $0xb8] sm:$0xff]
  %v170 = vld [vmem:[%s0 + $0xc0] sm:$0xff]
  %v171 = vld [vmem:[%s0 + $0xc8] sm:$0xff]
  %v172 = vld [vmem:[%s0 + $0xd0] sm:$0xff]
  %v173 = vld [vmem:[%s0 + $0xd8] sm:$0xff]
  %v174 = vld [vmem:[%s0 + $0xe0] sm:$0xff]
  %v175 = vld [vmem:[%s0 + $0xe8] sm:$0xff]
  %v176 = vld [vmem:[%s0 + $0xf0] sm:$0xff]
  %v177 = vld [vmem:[%s0 + $0xf8] sm:$0xff]
  %v178 = vld [vmem:[%s0 + $0x100] sm:$0xff]
  %v179 = vld [vmem:[%s0 + $0x108] sm:$0xff]
  %v180 = vld [vmem:[%s0 + $0x110] sm:$0xff]
  %v181 = vld [vmem:[%s0 + $0x118] sm:$0xff]
  %v182 = vld [vmem:[%s0 + $0x120] sm:$0xff]
  %v183 = vld [vmem:[%s0 + $0x128] sm:$0xff]
  %v184 = vld [vmem:[%s0 + $0x130] sm:$0xff]
  %v185 = vld [vmem:[%s0 + $0x138] sm:$0xff]
  %v186 = vld [vmem:[%s0 + $0x140] sm:$0xff]
  %v187 = vld [vmem:[%s0 + $0x148] sm:$0xff]
  %v188 = vld [vmem:[%s0 + $0x150] sm:$0xff]
  %v189 = vld [vmem:[%s0 + $0x158] sm:$0xff]
  %v190 = vld [vmem:[%s0 + $0x160] sm:$0xff]
  %v191 = vld [vmem:[%s0 + $0x168] sm:$0xff]
  %v192 = vld [vmem:[%s0 + $0x170] sm:$0xff]
  %v193 = vld [vmem:[%s0 + $0x178] sm:$0xff]
  %v194 = vld [vmem:[%s0 + $0x180] sm:$0xff]
  %v195 = vld [vmem:[%s0 + $0x188] sm:$0xff]
  %v196 = vld [vmem:[%s0 + $0x190] sm:$0xff]
  %v197 = vld [vmem:[%s0 + $0x198] sm:$0xff]
  %v198 = vld [vmem:[%s0 + $0x1a0] sm:$0xff]
  %v199 = vld [vmem:[%s0 + $0x1a8] sm:$0xff]
  %v200 = vld [vmem:[%s0 + $0x1b0] sm:$0xff]
  %v201 = vld [vmem:[%s0 + $0x1b8] sm:$0xff]
  %v202 = vld [vmem:[%s0 + $0x1c0] sm:$0xff]
  %v203 = vld [vmem:[%s0 + $0x1c8] sm:$0xff]
  %v204 = vld [vmem:[%s0 + $0x1d0] sm:$0xff]
  %v205 = vld [vmem:[%s0 + $0x1d8] sm:$0xff]
  %v206 = vld [vmem:[%s0 + $0x1e0] sm:$0xff]
  %v207 = vld [vmem:[%s0 + $0x1e8] sm:$0xff]
  %v208 = vld [vmem:[%s0 + $0x1f0] sm:$0xff]
  %v209 = vld [vmem:[%s0 + $0x1f8] sm:$0xff]
  %v210 = vld [vmem:[%s1] sm:$0xff]
  %v211 = vld [vmem:[%s1 + $0x8] sm:$0xff]
  %v212 = vld [vmem:[%s1 + $0x10] sm:$0xff]
  %v213 = vld [vmem:[%s1 + $0x18] sm:$0xff]
  %v214 = vld [vmem:[%s1 + $0x20] sm:$0xff]
  %v215 = vld [vmem:[%s1 + $0x28] sm:$0xff]
  %v216 = vld [vmem:[%s1 + $0x30] sm:$0xff]
  %v217 = vld [vmem:[%s1 + $0x38] sm:$0xff]
  %v218 = vld [vmem:[%s1 + $0x40] sm:$0xff]
  %v219 = vld [vmem:[%s1 + $0x48] sm:$0xff]
  %v220 = vld [vmem:[%s1 + $0x50] sm:$0xff]
  %v221 = vld [vmem:[%s1 + $0x58] sm:$0xff]
  %v222 = vld [vmem:[%s1 + $0x60] sm:$0xff]
  %v223 = vld [vmem:[%s1 + $0x68] sm:$0xff]
  %v224 = vld [vmem:[%s1 + $0x70] sm:$0xff]
  %v225 = vld [vmem:[%s1 + $0x78] sm:$0xff]
  %226 = vmatprep.subr.mxu0 0.0
  %227 = vmatpush1.msra.mxu0 %v225
  %228 = vmatprep.subr.mxu0 0.0
  %229 = vmatpush1.msra.mxu0 %v224
  %230 = vmatprep.subr.mxu0 0.0
  %231 = vmatpush1.msra.mxu0 %v223
  %232 = vmatprep.subr.mxu0 0.0
  %233 = vmatpush1.msra.mxu0 %v222
  %234 = vmatprep.subr.mxu0 0.0
  %235 = vmatpush1.msra.mxu0 %v221
  %236 = vmatprep.subr.mxu0 0.0
  %237 = vmatpush1.msra.mxu0 %v220
  %238 = vmatprep.subr.mxu0 0.0
  %239 = vmatpush1.msra.mxu0 %v219
  %240 = vmatprep.subr.mxu0 0.0
  %241 = vmatpush1.msra.mxu0 %v218
  %242 = vmatprep.subr.mxu0 0.0
  %243 = vmatpush1.msra.mxu0 %v217
  %244 = vmatprep.subr.mxu0 0.0
  %245 = vmatpush1.msra.mxu0 %v216
  %246 = vmatprep.subr.mxu0 0.0
  %247 = vmatpush1.msra.mxu0 %v215
  %248 = vmatprep.subr.mxu0 0.0
  %249 = vmatpush1.msra.mxu0 %v214
  %250 = vmatprep.subr.mxu0 0.0
  %251 = vmatpush1.msra.mxu0 %v213
  %252 = vmatprep.subr.mxu0 0.0
  %253 = vmatpush1.msra.mxu0 %v212
  %254 = vmatprep.subr.mxu0 0.0
  %255 = vmatpush1.msra.mxu0 %v211
  %256 = vmatprep.subr.mxu0 0.0
  %257 = vmatpush1.msra.mxu0 %v210
  %258 = vmatprep.subr.mxu0 0.0
  %259 = vmatpush2.msra.mxu0 0.0
  %260 = vmatprep.subr.mxu0 0.0
  %261 = vmatpush2.msra.mxu0 0.0
  %262 = vmatprep.subr.mxu0 0.0
  %263 = vmatpush2.msra.mxu0 0.0
  %264 = vmatprep.subr.mxu0 0.0
  %265 = vmatpush2.msra.mxu0 0.0
  %266 = vmatprep.subr.mxu0 0.0
  %267 = vmatpush2.msra.mxu0 0.0
  %268 = vmatprep.subr.mxu0 0.0
  %269 = vmatpush2.msra.mxu0 0.0
  %270 = vmatprep.subr.mxu0 0.0
  %271 = vmatpush2.msra.mxu0 0.0
  %272 = vmatprep.subr.mxu0 0.0
  %273 = vmatpush2.msra.mxu0 0.0
  %274 = vmatprep.subr.mxu0 0.0
  %275 = vmatpush2.msra.mxu0 0.0
  %276 = vmatprep.subr.mxu0 0.0
  %277 = vmatpush2.msra.mxu0 0.0
  %278 = vmatprep.subr.mxu0 0.0
  %279 = vmatpush2.msra.mxu0 0.0
  %280 = vmatprep.subr.mxu0 0.0
  %281 = vmatpush2.msra.mxu0 0.0
  %282 = vmatprep.subr.mxu0 0.0
  %283 = vmatpush2.msra.mxu0 0.0
  %284 = vmatprep.subr.mxu0 0.0
  %285 = vmatpush2.msra.mxu0 0.0
  %286 = vmatprep.subr.mxu0 0.0
  %287 = vmatpush2.msra.mxu0 0.0
  %288 = vmatprep.subr.mxu0 0.0
  %289 = vmatpush2.msra.mxu0 0.0
  %290 = vmatprep.mubr.f32.mxu0 0.0
  %291 = vmatmul.mubr.f32.gmra.mxu0 %v146
  %v292 = vpop.f32.mrf.mxu0
  %v293 = vadd.f32 0.0, %v292
  %v294 = vpop.f32.mrf.mxu0
  %295 = vmatprep.mubr.f32.mxu0 0.0
  %296 = vmatmul.mubr.f32.gmra.mxu0 %v147
  %v297 = vpop.f32.mrf.mxu0
  %v298 = vadd.f32 0.0, %v297
  %v299 = vpop.f32.mrf.mxu0
  %300 = vmatprep.mubr.f32.mxu0 0.0
  %301 = vmatmul.mubr.f32.gmra.mxu0 %v148
  %v302 = vpop.f32.mrf.mxu0
  %v303 = vadd.f32 0.0, %v302
  %v304 = vpop.f32.mrf.mxu0
  %305 = vmatprep.mubr.f32.mxu0 0.0
  %306 = vmatmul.mubr.f32.gmra.mxu0 %v149
  %v307 = vpop.f32.mrf.mxu0
  %v308 = vadd.f32 0.0, %v307
  %v309 = vpop.f32.mrf.mxu0
  %310 = vmatprep.mubr.f32.mxu0 0.0
  %311 = vmatmul.mubr.f32.gmra.mxu0 %v150
  %v312 = vpop.f32.mrf.mxu0
  %v313 = vadd.f32 0.0, %v312
  %v314 = vpop.f32.mrf.mxu0
  %315 = vmatprep.mubr.f32.mxu0 0.0
  %316 = vmatmul.mubr.f32.gmra.mxu0 %v151
  %v317 = vpop.f32.mrf.mxu0
  %v318 = vadd.f32 0.0, %v317
  %v319 = vpop.f32.mrf.mxu0
  %320 = vmatprep.mubr.f32.mxu0 0.0
  %321 = vmatmul.mubr.f32.gmra.mxu0 %v152
  %v322 = vpop.f32.mrf.mxu0
  %v323 = vadd.f32 0.0, %v322
  %v324 = vpop.f32.mrf.mxu0
  %325 = vmatprep.mubr.f32.mxu0 0.0
  %326 = vmatmul.mubr.f32.gmra.mxu0 %v153
  %v327 = vpop.f32.mrf.mxu0
  %v328 = vadd.f32 0.0, %v327
  %v329 = vpop.f32.mrf.mxu0
  %330 = vmatprep.mubr.f32.mxu0 0.0
  %331 = vmatmul.mubr.f32.gmra.mxu0 %v154
  %v332 = vpop.f32.mrf.mxu0
  %v333 = vadd.f32 0.0, %v332
  %v334 = vpop.f32.mrf.mxu0
  %335 = vmatprep.mubr.f32.mxu0 0.0
  %336 = vmatmul.mubr.f32.gmra.mxu0 %v155
  %v337 = vpop.f32.mrf.mxu0
  %v338 = vadd.f32 0.0, %v337
  %v339 = vpop.f32.mrf.mxu0
  %340 = vmatprep.mubr.f32.mxu0 0.0
  %341 = vmatmul.mubr.f32.gmra.mxu0 %v156
  %v342 = vpop.f32.mrf.mxu0
  %v343 = vadd.f32 0.0, %v342
  %v344 = vpop.f32.mrf.mxu0
  %345 = vmatprep.mubr.f32.mxu0 0.0
  %346 = vmatmul.mubr.f32.gmra.mxu0 %v157
  %v347 = vpop.f32.mrf.mxu0
  %v348 = vadd.f32 0.0, %v347
  %v349 = vpop.f32.mrf.mxu0
  %350 = vmatprep.mubr.f32.mxu0 0.0
  %351 = vmatmul.mubr.f32.gmra.mxu0 %v158
  %v352 = vpop.f32.mrf.mxu0
  %v353 = vadd.f32 0.0, %v352
  %v354 = vpop.f32.mrf.mxu0
  %355 = vmatprep.mubr.f32.mxu0 0.0
  %356 = vmatmul.mubr.f32.gmra.mxu0 %v159
  %v357 = vpop.f32.mrf.mxu0
  %v358 = vadd.f32 0.0, %v357
  %v359 = vpop.f32.mrf.mxu0
  %360 = vmatprep.mubr.f32.mxu0 0.0
  %361 = vmatmul.mubr.f32.gmra.mxu0 %v160
  %v362 = vpop.f32.mrf.mxu0
  %v363 = vadd.f32 0.0, %v362
  %v364 = vpop.f32.mrf.mxu0
  %365 = vmatprep.mubr.f32.mxu0 0.0
  %366 = vmatmul.mubr.f32.gmra.mxu0 %v161
  %v367 = vpop.f32.mrf.mxu0
  %v368 = vadd.f32 0.0, %v367
  %v369 = vpop.f32.mrf.mxu0
  %370 = vmatprep.mubr.f32.mxu0 0.0
  %371 = vmatmul.mubr.f32.gmra.mxu0 %v162
  %v372 = vpop.f32.mrf.mxu0
  %v373 = vadd.f32 0.0, %v372
  %v374 = vpop.f32.mrf.mxu0
  %375 = vmatprep.mubr.f32.mxu0 0.0
  %376 = vmatmul.mubr.f32.gmra.mxu0 %v163
  %v377 = vpop.f32.mrf.mxu0
  %v378 = vadd.f32 0.0, %v377
  %v379 = vpop.f32.mrf.mxu0
  %380 = vmatprep.mubr.f32.mxu0 0.0
  %381 = vmatmul.mubr.f32.gmra.mxu0 %v164
  %v382 = vpop.f32.mrf.mxu0
  %v383 = vadd.f32 0.0, %v382
  %v384 = vpop.f32.mrf.mxu0
  %385 = vmatprep.mubr.f32.mxu0 0.0
  %386 = vmatmul.mubr.f32.gmra.mxu0 %v165
  %v387 = vpop.f32.mrf.mxu0
  %v388 = vadd.f32 0.0, %v387
  %v389 = vpop.f32.mrf.mxu0
  %390 = vmatprep.mubr.f32.mxu0 0.0
  %391 = vmatmul.mubr.f32.gmra.mxu0 %v166
  %v392 = vpop.f32.mrf.mxu0
  %v393 = vadd.f32 0.0, %v392
  %v394 = vpop.f32.mrf.mxu0
  %395 = vmatprep.mubr.f32.mxu0 0.0
  %396 = vmatmul.mubr.f32.gmra.mxu0 %v167
  %v397 = vpop.f32.mrf.mxu0
  %v398 = vadd.f32 0.0, %v397
  %v399 = vpop.f32.mrf.mxu0
  %400 = vmatprep.mubr.f32.mxu0 0.0
  %401 = vmatmul.mubr.f32.gmra.mxu0 %v168
  %v402 = vpop.f32.mrf.mxu0
  %v403 = vadd.f32 0.0, %v402
  %v404 = vpop.f32.mrf.mxu0
  %405 = vmatprep.mubr.f32.mxu0 0.0
  %406 = vmatmul.mubr.f32.gmra.mxu0 %v169
  %v407 = vpop.f32.mrf.mxu0
  %v408 = vadd.f32 0.0, %v407
  %v409 = vpop.f32.mrf.mxu0
  %410 = vmatprep.mubr.f32.mxu0 0.0
  %411 = vmatmul.mubr.f32.gmra.mxu0 %v170
  %v412 = vpop.f32.mrf.mxu0
  %v413 = vadd.f32 0.0, %v412
  %v414 = vpop.f32.mrf.mxu0
  %415 = vmatprep.mubr.f32.mxu0 0.0
  %416 = vmatmul.mubr.f32.gmra.mxu0 %v171
  %v417 = vpop.f32.mrf.mxu0
  %v418 = vadd.f32 0.0, %v417
  %v419 = vpop.f32.mrf.mxu0
  %420 = vmatprep.mubr.f32.mxu0 0.0
  %421 = vmatmul.mubr.f32.gmra.mxu0 %v172
  %v422 = vpop.f32.mrf.mxu0
  %v423 = vadd.f32 0.0, %v422
  %v424 = vpop.f32.mrf.mxu0
  %425 = vmatprep.mubr.f32.mxu0 0.0
  %426 = vmatmul.mubr.f32.gmra.mxu0 %v173
  %v427 = vpop.f32.mrf.mxu0
  %v428 = vadd.f32 0.0, %v427
  %v429 = vpop.f32.mrf.mxu0
  %430 = vmatprep.mubr.f32.mxu0 0.0
  %431 = vmatmul.mubr.f32.gmra.mxu0 %v174
  %v432 = vpop.f32.mrf.mxu0
  %v433 = vadd.f32 0.0, %v432
  %v434 = vpop.f32.mrf.mxu0
  %435 = vmatprep.mubr.f32.mxu0 0.0
  %436 = vmatmul.mubr.f32.gmra.mxu0 %v175
  %v437 = vpop.f32.mrf.mxu0
  %v438 = vadd.f32 0.0, %v437
  %v439 = vpop.f32.mrf.mxu0
  %440 = vmatprep.mubr.f32.mxu0 0.0
  %441 = vmatmul.mubr.f32.gmra.mxu0 %v176
  %v442 = vpop.f32.mrf.mxu0
  %v443 = vadd.f32 0.0, %v442
  %v444 = vpop.f32.mrf.mxu0
  %445 = vmatprep.mubr.f32.mxu0 0.0
  %446 = vmatmul.mubr.f32.gmra.mxu0 %v177
  %v447 = vpop.f32.mrf.mxu0
  %v448 = vadd.f32 0.0, %v447
  %v449 = vpop.f32.mrf.mxu0
  %450 = vmatprep.mubr.f32.mxu0 0.0
  %451 = vmatmul.mubr.f32.gmra.mxu0 %v178
  %v452 = vpop.f32.mrf.mxu0
  %v453 = vadd.f32 0.0, %v452
  %v454 = vpop.f32.mrf.mxu0
  %455 = vmatprep.mubr.f32.mxu0 0.0
  %456 = vmatmul.mubr.f32.gmra.mxu0 %v179
  %v457 = vpop.f32.mrf.mxu0
  %v458 = vadd.f32 0.0, %v457
  %v459 = vpop.f32.mrf.mxu0
  %460 = vmatprep.mubr.f32.mxu0 0.0
  %461 = vmatmul.mubr.f32.gmra.mxu0 %v180
  %v462 = vpop.f32.mrf.mxu0
  %v463 = vadd.f32 0.0, %v462
  %v464 = vpop.f32.mrf.mxu0
  %465 = vmatprep.mubr.f32.mxu0 0.0
  %466 = vmatmul.mubr.f32.gmra.mxu0 %v181
  %v467 = vpop.f32.mrf.mxu0
  %v468 = vadd.f32 0.0, %v467
  %v469 = vpop.f32.mrf.mxu0
  %470 = vmatprep.mubr.f32.mxu0 0.0
  %471 = vmatmul.mubr.f32.gmra.mxu0 %v182
  %v472 = vpop.f32.mrf.mxu0
  %v473 = vadd.f32 0.0, %v472
  %v474 = vpop.f32.mrf.mxu0
  %475 = vmatprep.mubr.f32.mxu0 0.0
  %476 = vmatmul.mubr.f32.gmra.mxu0 %v183
  %v477 = vpop.f32.mrf.mxu0
  %v478 = vadd.f32 0.0, %v477
  %v479 = vpop.f32.mrf.mxu0
  %480 = vmatprep.mubr.f32.mxu0 0.0
  %481 = vmatmul.mubr.f32.gmra.mxu0 %v184
  %v482 = vpop.f32.mrf.mxu0
  %v483 = vadd.f32 0.0, %v482
  %v484 = vpop.f32.mrf.mxu0
  %485 = vmatprep.mubr.f32.mxu0 0.0
  %486 = vmatmul.mubr.f32.gmra.mxu0 %v185
  %v487 = vpop.f32.mrf.mxu0
  %v488 = vadd.f32 0.0, %v487
  %v489 = vpop.f32.mrf.mxu0
  %490 = vmatprep.mubr.f32.mxu0 0.0
  %491 = vmatmul.mubr.f32.gmra.mxu0 %v186
  %v492 = vpop.f32.mrf.mxu0
  %v493 = vadd.f32 0.0, %v492
  %v494 = vpop.f32.mrf.mxu0
  %495 = vmatprep.mubr.f32.mxu0 0.0
  %496 = vmatmul.mubr.f32.gmra.mxu0 %v187
  %v497 = vpop.f32.mrf.mxu0
  %v498 = vadd.f32 0.0, %v497
  %v499 = vpop.f32.mrf.mxu0
  %500 = vmatprep.mubr.f32.mxu0 0.0
  %501 = vmatmul.mubr.f32.gmra.mxu0 %v188
  %v502 = vpop.f32.mrf.mxu0
  %v503 = vadd.f32 0.0, %v502
  %v504 = vpop.f32.mrf.mxu0
  %505 = vmatprep.mubr.f32.mxu0 0.0
  %506 = vmatmul.mubr.f32.gmra.mxu0 %v189
  %v507 = vpop.f32.mrf.mxu0
  %v508 = vadd.f32 0.0, %v507
  %v509 = vpop.f32.mrf.mxu0
  %510 = vmatprep.mubr.f32.mxu0 0.0
  %511 = vmatmul.mubr.f32.gmra.mxu0 %v190
  %v512 = vpop.f32.mrf.mxu0
  %v513 = vadd.f32 0.0, %v512
  %v514 = vpop.f32.mrf.mxu0
  %515 = vmatprep.mubr.f32.mxu0 0.0
  %516 = vmatmul.mubr.f32.gmra.mxu0 %v191
  %v517 = vpop.f32.mrf.mxu0
  %v518 = vadd.f32 0.0, %v517
  %v519 = vpop.f32.mrf.mxu0
  %520 = vmatprep.mubr.f32.mxu0 0.0
  %521 = vmatmul.mubr.f32.gmra.mxu0 %v192
  %v522 = vpop.f32.mrf.mxu0
  %v523 = vadd.f32 0.0, %v522
  %v524 = vpop.f32.mrf.mxu0
  %525 = vmatprep.mubr.f32.mxu0 0.0
  %526 = vmatmul.mubr.f32.gmra.mxu0 %v193
  %v527 = vpop.f32.mrf.mxu0
  %v528 = vadd.f32 0.0, %v527
  %v529 = vpop.f32.mrf.mxu0
  %530 = vmatprep.mubr.f32.mxu0 0.0
  %531 = vmatmul.mubr.f32.gmra.mxu0 %v194
  %v532 = vpop.f32.mrf.mxu0
  %v533 = vadd.f32 0.0, %v532
  %v534 = vpop.f32.mrf.mxu0
  %535 = vmatprep.mubr.f32.mxu0 0.0
  %536 = vmatmul.mubr.f32.gmra.mxu0 %v195
  %v537 = vpop.f32.mrf.mxu0
  %v538 = vadd.f32 0.0, %v537
  %v539 = vpop.f32.mrf.mxu0
  %540 = vmatprep.mubr.f32.mxu0 0.0
  %541 = vmatmul.mubr.f32.gmra.mxu0 %v196
  %v542 = vpop.f32.mrf.mxu0
  %v543 = vadd.f32 0.0, %v542
  %v544 = vpop.f32.mrf.mxu0
  %545 = vmatprep.mubr.f32.mxu0 0.0
  %546 = vmatmul.mubr.f32.gmra.mxu0 %v197
  %v547 = vpop.f32.mrf.mxu0
  %v548 = vadd.f32 0.0, %v547
  %v549 = vpop.f32.mrf.mxu0
  %550 = vmatprep.mubr.f32.mxu0 0.0
  %551 = vmatmul.mubr.f32.gmra.mxu0 %v198
  %v552 = vpop.f32.mrf.mxu0
  %v553 = vadd.f32 0.0, %v552
  %v554 = vpop.f32.mrf.mxu0
  %555 = vmatprep.mubr.f32.mxu0 0.0
  %556 = vmatmul.mubr.f32.gmra.mxu0 %v199
  %v557 = vpop.f32.mrf.mxu0
  %v558 = vadd.f32 0.0, %v557
  %v559 = vpop.f32.mrf.mxu0
  %560 = vmatprep.mubr.f32.mxu0 0.0
  %561 = vmatmul.mubr.f32.gmra.mxu0 %v200
  %v562 = vpop.f32.mrf.mxu0
  %v563 = vadd.f32 0.0, %v562
  %v564 = vpop.f32.mrf.mxu0
  %565 = vmatprep.mubr.f32.mxu0 0.0
  %566 = vmatmul.mubr.f32.gmra.mxu0 %v201
  %v567 = vpop.f32.mrf.mxu0
  %v568 = vadd.f32 0.0, %v567
  %v569 = vpop.f32.mrf.mxu0
  %570 = vmatprep.mubr.f32.mxu0 0.0
  %571 = vmatmul.mubr.f32.gmra.mxu0 %v202
  %v572 = vpop.f32.mrf.mxu0
  %v573 = vadd.f32 0.0, %v572
  %v574 = vpop.f32.mrf.mxu0
  %575 = vmatprep.mubr.f32.mxu0 0.0
  %576 = vmatmul.mubr.f32.gmra.mxu0 %v203
  %v577 = vpop.f32.mrf.mxu0
  %v578 = vadd.f32 0.0, %v577
  %v579 = vpop.f32.mrf.mxu0
  %580 = vmatprep.mubr.f32.mxu0 0.0
  %581 = vmatmul.mubr.f32.gmra.mxu0 %v204
  %v582 = vpop.f32.mrf.mxu0
  %v583 = vadd.f32 0.0, %v582
  %v584 = vpop.f32.mrf.mxu0
  %585 = vmatprep.mubr.f32.mxu0 0.0
  %586 = vmatmul.mubr.f32.gmra.mxu0 %v205
  %v587 = vpop.f32.mrf.mxu0
  %v588 = vadd.f32 0.0, %v587
  %v589 = vpop.f32.mrf.mxu0
  %590 = vmatprep.mubr.f32.mxu0 0.0
  %591 = vmatmul.mubr.f32.gmra.mxu0 %v206
  %v592 = vpop.f32.mrf.mxu0
  %v593 = vadd.f32 0.0, %v592
  %v594 = vpop.f32.mrf.mxu0
  %595 = vmatprep.mubr.f32.mxu0 0.0
  %596 = vmatmul.mubr.f32.gmra.mxu0 %v207
  %v597 = vpop.f32.mrf.mxu0
  %v598 = vadd.f32 0.0, %v597
  %v599 = vpop.f32.mrf.mxu0
  %600 = vmatprep.mubr.f32.mxu0 0.0
  %601 = vmatmul.mubr.f32.gmra.mxu0 %v208
  %v602 = vpop.f32.mrf.mxu0
  %v603 = vadd.f32 0.0, %v602
  %v604 = vpop.f32.mrf.mxu0
  %605 = vmatprep.mubr.f32.mxu0 0.0
  %606 = vmatmul.mubr.f32.gmra.mxu0 %v209
  %v607 = vpop.f32.mrf.mxu0
  %v608 = vadd.f32 0.0, %v607
  %v609 = vpop.f32.mrf.mxu0
  %610 = vdwg.mxu0
  %v611 = vadd.f32 %v82, %v293
  %v612 = vadd.f32 %v83, %v298
  %v613 = vadd.f32 %v84, %v303
  %v614 = vadd.f32 %v85, %v308
  %v615 = vadd.f32 %v86, %v313
  %v616 = vadd.f32 %v87, %v318
  %v617 = vadd.f32 %v88, %v323
  %v618 = vadd.f32 %v89, %v328
  %v619 = vadd.f32 %v90, %v333
  %v620 = vadd.f32 %v91, %v338
  %v621 = vadd.f32 %v92, %v343
  %v622 = vadd.f32 %v93, %v348
  %v623 = vadd.f32 %v94, %v353
  %v624 = vadd.f32 %v95, %v358
  %v625 = vadd.f32 %v96, %v363
  %v626 = vadd.f32 %v97, %v368
  %v627 = vadd.f32 %v98, %v373
  %v628 = vadd.f32 %v99, %v378
  %v629 = vadd.f32 %v100, %v383
  %v630 = vadd.f32 %v101, %v388
  %v631 = vadd.f32 %v102, %v393
  %v632 = vadd.f32 %v103, %v398
  %v633 = vadd.f32 %v104, %v403
  %v634 = vadd.f32 %v105, %v408
  %v635 = vadd.f32 %v106, %v413
  %v636 = vadd.f32 %v107, %v418
  %v637 = vadd.f32 %v108, %v423
  %v638 = vadd.f32 %v109, %v428
  %v639 = vadd.f32 %v110, %v433
  %v640 = vadd.f32 %v111, %v438
  %v641 = vadd.f32 %v112, %v443
  %v642 = vadd.f32 %v113, %v448
  %v643 = vadd.f32 %v114, %v453
  %v644 = vadd.f32 %v115, %v458
  %v645 = vadd.f32 %v116, %v463
  %v646 = vadd.f32 %v117, %v468
  %v647 = vadd.f32 %v118, %v473
  %v648 = vadd.f32 %v119, %v478
  %v649 = vadd.f32 %v120, %v483
  %v650 = vadd.f32 %v121, %v488
  %v651 = vadd.f32 %v122, %v493
  %v652 = vadd.f32 %v123, %v498
  %v653 = vadd.f32 %v124, %v503
  %v654 = vadd.f32 %v125, %v508
  %v655 = vadd.f32 %v126, %v513
  %v656 = vadd.f32 %v127, %v518
  %v657 = vadd.f32 %v128, %v523
  %v658 = vadd.f32 %v129, %v528
  %v659 = vadd.f32 %v130, %v533
  %v660 = vadd.f32 %v131, %v538
  %v661 = vadd.f32 %v132, %v543
  %v662 = vadd.f32 %v133, %v548
  %v663 = vadd.f32 %v134, %v553
  %v664 = vadd.f32 %v135, %v558
  %v665 = vadd.f32 %v136, %v563
  %v666 = vadd.f32 %v137, %v568
  %v667 = vadd.f32 %v138, %v573
  %v668 = vadd.f32 %v139, %v578
  %v669 = vadd.f32 %v140, %v583
  %v670 = vadd.f32 %v141, %v588
  %v671 = vadd.f32 %v142, %v593
  %v672 = vadd.f32 %v143, %v598
  %v673 = vadd.f32 %v144, %v603
  %v674 = vadd.f32 %v145, %v608
  %675 = vst [vmem:[#allocation2] sm:$0xff] %v611
  %676 = vst [vmem:[#allocation2 + $0x8] sm:$0xff] %v612
  %677 = vst [vmem:[#allocation2 + $0x10] sm:$0xff] %v613
  %678 = vst [vmem:[#allocation2 + $0x18] sm:$0xff] %v614
  %679 = vst [vmem:[#allocation2 + $0x20] sm:$0xff] %v615
  %680 = vst [vmem:[#allocation2 + $0x28] sm:$0xff] %v616
  %681 = vst [vmem:[#allocation2 + $0x30] sm:$0xff] %v617
  %682 = vst [vmem:[#allocation2 + $0x38] sm:$0xff] %v618
  %683 = vst [vmem:[#allocation2 + $0x40] sm:$0xff] %v619
  %684 = vst [vmem:[#allocation2 + $0x48] sm:$0xff] %v620
  %685 = vst [vmem:[#allocation2 + $0x50] sm:$0xff] %v621
  %686 = vst [vmem:[#allocation2 + $0x58] sm:$0xff] %v622
  %687 = vst [vmem:[#allocation2 + $0x60] sm:$0xff] %v623
  %688 = vst [vmem:[#allocation2 + $0x68] sm:$0xff] %v624
  %689 = vst [vmem:[#allocation2 + $0x70] sm:$0xff] %v625
  %690 = vst [vmem:[#allocation2 + $0x78] sm:$0xff] %v626
  %691 = vst [vmem:[#allocation2 + $0x80] sm:$0xff] %v627
  %692 = vst [vmem:[#allocation2 + $0x88] sm:$0xff] %v628
  %693 = vst [vmem:[#allocation2 + $0x90] sm:$0xff] %v629
  %694 = vst [vmem:[#allocation2 + $0x98] sm:$0xff] %v630
  %695 = vst [vmem:[#allocation2 + $0xa0] sm:$0xff] %v631
  %696 = vst [vmem:[#allocation2 + $0xa8] sm:$0xff] %v632
  %697 = vst [vmem:[#allocation2 + $0xb0] sm:$0xff] %v633
  %698 = vst [vmem:[#allocation2 + $0xb8] sm:$0xff] %v634
  %699 = vst [vmem:[#allocation2 + $0xc0] sm:$0xff] %v635
  %700 = vst [vmem:[#allocation2 + $0xc8] sm:$0xff] %v636
  %701 = vst [vmem:[#allocation2 + $0xd0] sm:$0xff] %v637
  %702 = vst [vmem:[#allocation2 + $0xd8] sm:$0xff] %v638
  %703 = vst [vmem:[#allocation2 + $0xe0] sm:$0xff] %v639
  %704 = vst [vmem:[#allocation2 + $0xe8] sm:$0xff] %v640
  %705 = vst [vmem:[#allocation2 + $0xf0] sm:$0xff] %v641
  %706 = vst [vmem:[#allocation2 + $0xf8] sm:$0xff] %v642
  %707 = vst [vmem:[#allocation2 + $0x100] sm:$0xff] %v643
  %708 = vst [vmem:[#allocation2 + $0x108] sm:$0xff] %v644
  %709 = vst [vmem:[#allocation2 + $0x110] sm:$0xff] %v645
  %710 = vst [vmem:[#allocation2 + $0x118] sm:$0xff] %v646
  %711 = vst [vmem:[#allocation2 + $0x120] sm:$0xff] %v647
  %712 = vst [vmem:[#allocation2 + $0x128] sm:$0xff] %v648
  %713 = vst [vmem:[#allocation2 + $0x130] sm:$0xff] %v649
  %714 = vst [vmem:[#allocation2 + $0x138] sm:$0xff] %v650
  %715 = vst [vmem:[#allocation2 + $0x140] sm:$0xff] %v651
  %716 = vst [vmem:[#allocation2 + $0x148] sm:$0xff] %v652
  %717 = vst [vmem:[#allocation2 + $0x150] sm:$0xff] %v653
  %718 = vst [vmem:[#allocation2 + $0x158] sm:$0xff] %v654
  %719 = vst [vmem:[#allocation2 + $0x160] sm:$0xff] %v655
  %720 = vst [vmem:[#allocation2 + $0x168] sm:$0xff] %v656
  %721 = vst [vmem:[#allocation2 + $0x170] sm:$0xff] %v657
  %722 = vst [vmem:[#allocation2 + $0x178] sm:$0xff] %v658
  %723 = vst [vmem:[#allocation2 + $0x180] sm:$0xff] %v659
  %724 = vst [vmem:[#allocation2 + $0x188] sm:$0xff] %v660
  %725 = vst [vmem:[#allocation2 + $0x190] sm:$0xff] %v661
  %726 = vst [vmem:[#allocation2 + $0x198] sm:$0xff] %v662
  %727 = vst [vmem:[#allocation2 + $0x1a0] sm:$0xff] %v663
  %728 = vst [vmem:[#allocation2 + $0x1a8] sm:$0xff] %v664
  %729 = vst [vmem:[#allocation2 + $0x1b0] sm:$0xff] %v665
  %730 = vst [vmem:[#allocation2 + $0x1b8] sm:$0xff] %v666
  %731 = vst [vmem:[#allocation2 + $0x1c0] sm:$0xff] %v667
  %732 = vst [vmem:[#allocation2 + $0x1c8] sm:$0xff] %v668
  %733 = vst [vmem:[#allocation2 + $0x1d0] sm:$0xff] %v669
  %734 = vst [vmem:[#allocation2 + $0x1d8] sm:$0xff] %v670
  %735 = vst [vmem:[#allocation2 + $0x1e0] sm:$0xff] %v671
  %736 = vst [vmem:[#allocation2 + $0x1e8] sm:$0xff] %v672
  %737 = vst [vmem:[#allocation2 + $0x1f0] sm:$0xff] %v673
  %738 = vst [vmem:[#allocation2 + $0x1f8] sm:$0xff] %v674
  // Predicated region
  $region14: #{conv_block_forward.2} parent=0 // pred_check
    %p739 = pneg %p14
  $region15: #{conv_block_forward.2} parent=0 // pred_check_branch
    %741 = sbr.rel (%p739) target = $region17
  $region16: #{conv_block_forward.2} parent=0 // pred_region
    %v742 = vld [vmem:[#allocation2] sm:$0xff]
    %v743 = vld [vmem:[#allocation2 + $0x8] sm:$0xff]
    %v744 = vld [vmem:[#allocation2 + $0x10] sm:$0xff]
    %v745 = vld [vmem:[#allocation2 + $0x18] sm:$0xff]
    %v746 = vld [vmem:[#allocation2 + $0x20] sm:$0xff]
    %v747 = vld [vmem:[#allocation2 + $0x28] sm:$0xff]
    %v748 = vld [vmem:[#allocation2 + $0x30] sm:$0xff]
    %v749 = vld [vmem:[#allocation2 + $0x38] sm:$0xff]
    %v750 = vld [vmem:[#allocation2 + $0x40] sm:$0xff]
    %v751 = vld [vmem:[#allocation2 + $0x48] sm:$0xff]
    %v752 = vld [vmem:[#allocation2 + $0x50] sm:$0xff]
    %v753 = vld [vmem:[#allocation2 + $0x58] sm:$0xff]
    %v754 = vld [vmem:[#allocation2 + $0x60] sm:$0xff]
    %v755 = vld [vmem:[#allocation2 + $0x68] sm:$0xff]
    %v756 = vld [vmem:[#allocation2 + $0x70] sm:$0xff]
    %v757 = vld [vmem:[#allocation2 + $0x78] sm:$0xff]
    %v758 = vld [vmem:[#allocation2 + $0x80] sm:$0xff]
    %v759 = vld [vmem:[#allocation2 + $0x88] sm:$0xff]
    %v760 = vld [vmem:[#allocation2 + $0x90] sm:$0xff]
    %v761 = vld [vmem:[#allocation2 + $0x98] sm:$0xff]
    %v762 = vld [vmem:[#allocation2 + $0xa0] sm:$0xff]
    %v763 = vld [vmem:[#allocation2 + $0xa8] sm:$0xff]
    %v764 = vld [vmem:[#allocation2 + $0xb0] sm:$0xff]
    %v765 = vld [vmem:[#allocation2 + $0xb8] sm:$0xff]
    %v766 = vld [vmem:[#allocation2 + $0xc0] sm:$0xff]
    %v767 = vld [vmem:[#allocation2 + $0xc8] sm:$0xff]
    %v768 = vld [vmem:[#allocation2 + $0xd0] sm:$0xff]
    %v769 = vld [vmem:[#allocation2 + $0xd8] sm:$0xff]
    %v770 = vld [vmem:[#allocation2 + $0xe0] sm:$0xff]
    %v771 = vld [vmem:[#allocation2 + $0xe8] sm:$0xff]
    %v772 = vld [vmem:[#allocation2 + $0xf0] sm:$0xff]
    %v773 = vld [vmem:[#allocation2 + $0xf8] sm:$0xff]
    %v774 = vld [vmem:[#allocation2 + $0x100] sm:$0xff]
    %v775 = vld [vmem:[#allocation2 + $0x108] sm:$0xff]
    %v776 = vld [vmem:[#allocation2 + $0x110] sm:$0xff]
    %v777 = vld [vmem:[#allocation2 + $0x118] sm:$0xff]
    %v778 = vld [vmem:[#allocation2 + $0x120] sm:$0xff]
    %v779 = vld [vmem:[#allocation2 + $0x128] sm:$0xff]
    %v780 = vld [vmem:[#allocation2 + $0x130] sm:$0xff]
    %v781 = vld [vmem:[#allocation2 + $0x138] sm:$0xff]
    %v782 = vld [vmem:[#allocation2 + $0x140] sm:$0xff]
    %v783 = vld [vmem:[#allocation2 + $0x148] sm:$0xff]
    %v784 = vld [vmem:[#allocation2 + $0x150] sm:$0xff]
    %v785 = vld [vmem:[#allocation2 + $0x158] sm:$0xff]
    %v786 = vld [vmem:[#allocation2 + $0x160] sm:$0xff]
    %v787 = vld [vmem:[#allocation2 + $0x168] sm:$0xff]
    %v788 = vld [vmem:[#allocation2 + $0x170] sm:$0xff]
    %v789 = vld [vmem:[#allocation2 + $0x178] sm:$0xff]
    %v790 = vld [vmem:[#allocation2 + $0x180] sm:$0xff]
    %v791 = vld [vmem:[#allocation2 + $0x188] sm:$0xff]
    %v792 = vld [vmem:[#allocation2 + $0x190] sm:$0xff]
    %v793 = vld [vmem:[#allocation2 + $0x198] sm:$0xff]
    %v794 = vld [vmem:[#allocation2 + $0x1a0] sm:$0xff]
    %v795 = vld [vmem:[#allocation2 + $0x1a8] sm:$0xff]
    %v796 = vld [vmem:[#allocation2 + $0x1b0] sm:$0xff]
    %v797 = vld [vmem:[#allocation2 + $0x1b8] sm:$0xff]
    %v798 = vld [vmem:[#allocation2 + $0x1c0] sm:$0xff]
    %v799 = vld [vmem:[#allocation2 + $0x1c8] sm:$0xff]
    %v800 = vld [vmem:[#allocation2 + $0x1d0] sm:$0xff]
    %v801 = vld [vmem:[#allocation2 + $0x1d8] sm:$0xff]
    %v802 = vld [vmem:[#allocation2 + $0x1e0] sm:$0xff]
    %v803 = vld [vmem:[#allocation2 + $0x1e8] sm:$0xff]
    %v804 = vld [vmem:[#allocation2 + $0x1f0] sm:$0xff]
    %v805 = vld [vmem:[#allocation2 + $0x1f8] sm:$0xff]
    %806 = vst [vmem:[%s2] sm:$0xff] %v742
    %807 = vst [vmem:[%s2 + $0x8] sm:$0xff] %v743
    %808 = vst [vmem:[%s2 + $0x10] sm:$0xff] %v744
    %809 = vst [vmem:[%s2 + $0x18] sm:$0xff] %v745
    %810 = vst [vmem:[%s2 + $0x20] sm:$0xff] %v746
    %811 = vst [vmem:[%s2 + $0x28] sm:$0xff] %v747
    %812 = vst [vmem:[%s2 + $0x30] sm:$0xff] %v748
    %813 = vst [vmem:[%s2 + $0x38] sm:$0xff] %v749
    %814 = vst [vmem:[%s2 + $0x40] sm:$0xff] %v750
    %815 = vst [vmem:[%s2 + $0x48] sm:$0xff] %v751
    %816 = vst [vmem:[%s2 + $0x50] sm:$0xff] %v752
    %817 = vst [vmem:[%s2 + $0x58] sm:$0xff] %v753
    %818 = vst [vmem:[%s2 + $0x60] sm:$0xff] %v754
    %819 = vst [vmem:[%s2 + $0x68] sm:$0xff] %v755
    %820 = vst [vmem:[%s2 + $0x70] sm:$0xff] %v756
    %821 = vst [vmem:[%s2 + $0x78] sm:$0xff] %v757
    %822 = vst [vmem:[%s2 + $0x80] sm:$0xff] %v758
    %823 = vst [vmem:[%s2 + $0x88] sm:$0xff] %v759
    %824 = vst [vmem:[%s2 + $0x90] sm:$0xff] %v760
    %825 = vst [vmem:[%s2 + $0x98] sm:$0xff] %v761
    %826 = vst [vmem:[%s2 + $0xa0] sm:$0xff] %v762
    %827 = vst [vmem:[%s2 + $0xa8] sm:$0xff] %v763
    %828 = vst [vmem:[%s2 + $0xb0] sm:$0xff] %v764
    %829 = vst [vmem:[%s2 + $0xb8] sm:$0xff] %v765
    %830 = vst [vmem:[%s2 + $0xc0] sm:$0xff] %v766
    %831 = vst [vmem:[%s2 + $0xc8] sm:$0xff] %v767
    %832 = vst [vmem:[%s2 + $0xd0] sm:$0xff] %v768
    %833 = vst [vmem:[%s2 + $0xd8] sm:$0xff] %v769
    %834 = vst [vmem:[%s2 + $0xe0] sm:$0xff] %v770
    %835 = vst [vmem:[%s2 + $0xe8] sm:$0xff] %v771
    %836 = vst [vmem:[%s2 + $0xf0] sm:$0xff] %v772
    %837 = vst [vmem:[%s2 + $0xf8] sm:$0xff] %v773
    %838 = vst [vmem:[%s2 + $0x100] sm:$0xff] %v774
    %839 = vst [vmem:[%s2 + $0x108] sm:$0xff] %v775
    %840 = vst [vmem:[%s2 + $0x110] sm:$0xff] %v776
    %841 = vst [vmem:[%s2 + $0x118] sm:$0xff] %v777
    %842 = vst [vmem:[%s2 + $0x120] sm:$0xff] %v778
    %843 = vst [vmem:[%s2 + $0x128] sm:$0xff] %v779
    %844 = vst [vmem:[%s2 + $0x130] sm:$0xff] %v780
    %845 = vst [vmem:[%s2 + $0x138] sm:$0xff] %v781
    %846 = vst [vmem:[%s2 + $0x140] sm:$0xff] %v782
    %847 = vst [vmem:[%s2 + $0x148] sm:$0xff] %v783
    %848 = vst [vmem:[%s2 + $0x150] sm:$0xff] %v784
    %849 = vst [vmem:[%s2 + $0x158] sm:$0xff] %v785
    %850 = vst [vmem:[%s2 + $0x160] sm:$0xff] %v786
    %851 = vst [vmem:[%s2 + $0x168] sm:$0xff] %v787
    %852 = vst [vmem:[%s2 + $0x170] sm:$0xff] %v788
    %853 = vst [vmem:[%s2 + $0x178] sm:$0xff] %v789
    %854 = vst [vmem:[%s2 + $0x180] sm:$0xff] %v790
    %855 = vst [vmem:[%s2 + $0x188] sm:$0xff] %v791
    %856 = vst [vmem:[%s2 + $0x190] sm:$0xff] %v792
    %857 = vst [vmem:[%s2 + $0x198] sm:$0xff] %v793
    %858 = vst [vmem:[%s2 + $0x1a0] sm:$0xff] %v794
    %859 = vst [vmem:[%s2 + $0x1a8] sm:$0xff] %v795
    %860 = vst [vmem:[%s2 + $0x1b0] sm:$0xff] %v796
    %861 = vst [vmem:[%s2 + $0x1b8] sm:$0xff] %v797
    %862 = vst [vmem:[%s2 + $0x1c0] sm:$0xff] %v798
    %863 = vst [vmem:[%s2 + $0x1c8] sm:$0xff] %v799
    %864 = vst [vmem:[%s2 + $0x1d0] sm:$0xff] %v800
    %865 = vst [vmem:[%s2 + $0x1d8] sm:$0xff] %v801
    %866 = vst [vmem:[%s2 + $0x1e0] sm:$0xff] %v802
    %867 = vst [vmem:[%s2 + $0x1e8] sm:$0xff] %v803
    %868 = vst [vmem:[%s2 + $0x1f0] sm:$0xff] %v804
    %869 = vst [vmem:[%s2 + $0x1f8] sm:$0xff] %v805
    %v870 = vadd.f32 %v742, %v743
    %v871 = vadd.f32 %v870, %v744
    %v872 = vadd.f32 %v871, %v745
    %v873 = vadd.f32 %v872, %v746
    %v874 = vadd.f32 %v873, %v747
    %v875 = vadd.f32 %v874, %v748
    %v876 = vadd.f32 %v875, %v749
    %v877 = vadd.f32 %v876, %v750
    %v878 = vadd.f32 %v877, %v751
    %v879 = vadd.f32 %v878, %v752
    %v880 = vadd.f32 %v879, %v753
    %v881 = vadd.f32 %v880, %v754
    %v882 = vadd.f32 %v881, %v755
    %v883 = vadd.f32 %v882, %v756
    %v884 = vadd.f32 %v883, %v757
    %v885 = vadd.f32 %v884, %v758
    %v886 = vadd.f32 %v885, %v759
    %v887 = vadd.f32 %v886, %v760
    %v888 = vadd.f32 %v887, %v761
    %v889 = vadd.f32 %v888, %v762
    %v890 = vadd.f32 %v889, %v763
    %v891 = vadd.f32 %v890, %v764
    %v892 = vadd.f32 %v891, %v765
    %v893 = vadd.f32 %v892, %v766
    %v894 = vadd.f32 %v893, %v767
    %v895 = vadd.f32 %v894, %v768
    %v896 = vadd.f32 %v895, %v769
    %v897 = vadd.f32 %v896, %v770
    %v898 = vadd.f32 %v897, %v771
    %v899 = vadd.f32 %v898, %v772
    %v900 = vadd.f32 %v899, %v773
    %v901 = vadd.f32 %v900, %v774
    %v902 = vadd.f32 %v901, %v775
    %v903 = vadd.f32 %v902, %v776
    %v904 = vadd.f32 %v903, %v777
    %v905 = vadd.f32 %v904, %v778
    %v906 = vadd.f32 %v905, %v779
    %v907 = vadd.f32 %v906, %v780
    %v908 = vadd.f32 %v907, %v781
    %v909 = vadd.f32 %v908, %v782
    %v910 = vadd.f32 %v909, %v783
    %v911 = vadd.f32 %v910, %v784
    %v912 = vadd.f32 %v911, %v785
    %v913 = vadd.f32 %v912, %v786
    %v914 = vadd.f32 %v913, %v787
    %v915 = vadd.f32 %v914, %v788
    %v916 = vadd.f32 %v915, %v789
    %v917 = vadd.f32 %v916, %v790
    %v918 = vadd.f32 %v917, %v791
    %v919 = vadd.f32 %v918, %v792
    %v920 = vadd.f32 %v919, %v793
    %v921 = vadd.f32 %v920, %v794
    %v922 = vadd.f32 %v921, %v795
    %v923 = vadd.f32 %v922, %v796
    %v924 = vadd.f32 %v923, %v797
    %v925 = vadd.f32 %v924, %v798
    %v926 = vadd.f32 %v925, %v799
    %v927 = vadd.f32 %v926, %v800
    %v928 = vadd.f32 %v927, %v801
    %v929 = vadd.f32 %v928, %v802
    %v930 = vadd.f32 %v929, %v803
    %v931 = vadd.f32 %v930, %v804
    %v932 = vadd.f32 %v931, %v805
    %933 = vst [vmem:[%s3] sm:$0xff] %v932
    %v934 = vmul.f32 %v742, %v742
    %v935 = vmul.f32 %v743, %v743
    %v936 = vmul.f32 %v744, %v744
    %v937 = vmul.f32 %v745, %v745
    %v938 = vmul.f32 %v746, %v746
    %v939 = vmul.f32 %v747, %v747
    %v940 = vmul.f32 %v748, %v748
    %v941 = vmul.f32 %v749, %v749
    %v942 = vmul.f32 %v750, %v750
    %v943 = vmul.f32 %v751, %v751
    %v944 = vmul.f32 %v752, %v752
    %v945 = vmul.f32 %v753, %v753
    %v946 = vmul.f32 %v754, %v754
    %v947 = vmul.f32 %v755, %v755
    %v948 = vmul.f32 %v756, %v756
    %v949 = vmul.f32 %v757, %v757
    %v950 = vmul.f32 %v758, %v758
    %v951 = vmul.f32 %v759, %v759
    %v952 = vmul.f32 %v760, %v760
    %v953 = vmul.f32 %v761, %v761
    %v954 = vmul.f32 %v762, %v762
    %v955 = vmul.f32 %v763, %v763
    %v956 = vmul.f32 %v764, %v764
    %v957 = vmul.f32 %v765, %v765
    %v958 = vmul.f32 %v766, %v766
    %v959 = vmul.f32 %v767, %v767
    %v960 = vmul.f32 %v768, %v768
    %v961 = vmul.f32 %v769, %v769
    %v962 = vmul.f32 %v770, %v770
    %v963 = vmul.f32 %v771, %v771
    %v964 = vmul.f32 %v772, %v772
    %v965 = vmul.f32 %v773, %v773
    %v966 = vmul.f32 %v774, %v774
    %v967 = vmul.f32 %v775, %v775
    %v968 = vmul.f32 %v776, %v776
    %v969 = vmul.f32 %v777, %v777
    %v970 = vmul.f32 %v778, %v778
    %v971 = vmul.f32 %v779, %v779
    %v972 = vmul.f32 %v780, %v780
    %v973 = vmul.f32 %v781, %v781
    %v974 = vmul.f32 %v782, %v782
    %v975 = vmul.f32 %v783, %v783
    %v976 = vmul.f32 %v784, %v784
    %v977 = vmul.f32 %v785, %v785
    %v978 = vmul.f32 %v786, %v786
    %v979 = vmul.f32 %v787, %v787
    %v980 = vmul.f32 %v788, %v788
    %v981 = vmul.f32 %v789, %v789
    %v982 = vmul.f32 %v790, %v790
    %v983 = vmul.f32 %v791, %v791
    %v984 = vmul.f32 %v792, %v792
    %v985 = vmul.f32 %v793, %v793
    %v986 = vmul.f32 %v794, %v794
    %v987 = vmul.f32 %v795, %v795
    %v988 = vmul.f32 %v796, %v796
    %v989 = vmul.f32 %v797, %v797
    %v990 = vmul.f32 %v798, %v798
    %v991 = vmul.f32 %v799, %v799
    %v992 = vmul.f32 %v800, %v800
    %v993 = vmul.f32 %v801, %v801
    %v994 = vmul.f32 %v802, %v802
    %v995 = vmul.f32 %v803, %v803
    %v996 = vmul.f32 %v804, %v804
    %v997 = vmul.f32 %v805, %v805
    %v998 = vadd.f32 %v934, %v935
    %v999 = vadd.f32 %v998, %v936
    %v1000 = vadd.f32 %v999, %v937
    %v1001 = vadd.f32 %v1000, %v938
    %v1002 = vadd.f32 %v1001, %v939
    %v1003 = vadd.f32 %v1002, %v940
    %v1004 = vadd.f32 %v1003, %v941
    %v1005 = vadd.f32 %v1004, %v942
    %v1006 = vadd.f32 %v1005, %v943
    %v1007 = vadd.f32 %v1006, %v944
    %v1008 = vadd.f32 %v1007, %v945
    %v1009 = vadd.f32 %v1008, %v946
    %v1010 = vadd.f32 %v1009, %v947
    %v1011 = vadd.f32 %v1010, %v948
    %v1012 = vadd.f32 %v1011, %v949
    %v1013 = vadd.f32 %v1012, %v950
    %v1014 = vadd.f32 %v1013, %v951
    %v1015 = vadd.f32 %v1014, %v952
    %v1016 = vadd.f32 %v1015, %v953
    %v1017 = vadd.f32 %v1016, %v954
    %v1018 = vadd.f32 %v1017, %v955
    %v1019 = vadd.f32 %v1018, %v956
    %v1020 = vadd.f32 %v1019, %v957
    %v1021 = vadd.f32 %v1020, %v958
    %v1022 = vadd.f32 %v1021, %v959
    %v1023 = vadd.f32 %v1022, %v960
    %v1024 = vadd.f32 %v1023, %v961
    %v1025 = vadd.f32 %v1024, %v962
    %v1026 = vadd.f32 %v1025, %v963
    %v1027 = vadd.f32 %v1026, %v964
    %v1028 = vadd.f32 %v1027, %v965
    %v1029 = vadd.f32 %v1028, %v966
    %v1030 = vadd.f32 %v1029, %v967
    %v1031 = vadd.f32 %v1030, %v968
    %v1032 = vadd.f32 %v1031, %v969
    %v1033 = vadd.f32 %v1032, %v970
    %v1034 = vadd.f32 %v1033, %v971
    %v1035 = vadd.f32 %v1034, %v972
    %v1036 = vadd.f32 %v1035, %v973
    %v1037 = vadd.f32 %v1036, %v974
    %v1038 = vadd.f32 %v1037, %v975
    %v1039 = vadd.f32 %v1038, %v976
    %v1040 = vadd.f32 %v1039, %v977
    %v1041 = vadd.f32 %v1040, %v978
    %v1042 = vadd.f32 %v1041, %v979
    %v1043 = vadd.f32 %v1042, %v980
    %v1044 = vadd.f32 %v1043, %v981
    %v1045 = vadd.f32 %v1044, %v982
    %v1046 = vadd.f32 %v1045, %v983
    %v1047 = vadd.f32 %v1046, %v984
    %v1048 = vadd.f32 %v1047, %v985
    %v1049 = vadd.f32 %v1048, %v986
    %v1050 = vadd.f32 %v1049, %v987
    %v1051 = vadd.f32 %v1050, %v988
    %v1052 = vadd.f32 %v1051, %v989
    %v1053 = vadd.f32 %v1052, %v990
    %v1054 = vadd.f32 %v1053, %v991
    %v1055 = vadd.f32 %v1054, %v992
    %v1056 = vadd.f32 %v1055, %v993
    %v1057 = vadd.f32 %v1056, %v994
    %v1058 = vadd.f32 %v1057, %v995
    %v1059 = vadd.f32 %v1058, %v996
    %v1060 = vadd.f32 %v1059, %v997
    %1061 = vst [vmem:[%s4] sm:$0xff] %v1060
  $region17: #{conv_block_forward.2} parent=0 // pred_fallthru
    _
  // Predicated region
  $region18: #{conv_block_forward.2} parent=0 // pred_check
    _
  $region19: #{conv_block_forward.2} parent=0 // pred_check_branch
    %1063 = sbr.rel (0) target = $region21
  $region20: #{conv_block_forward.2} parent=0 // pred_region
    _
  $region21: #{conv_block_forward.2} parent=0 // pred_fallthru
    _
  // Predicated region
  $region22: #{conv_block_forward.2} parent=0 // pred_check
    _
  $region23: #{conv_block_forward.2} parent=0 // pred_check_branch
    %1065 = sbr.rel (0) target = $region25
  $region24: #{conv_block_forward.2} parent=0 // pred_region
    _
  $region25: #{conv_block_forward.2} parent=0 // pred_fallthru
    _
  // Predicated region
  $region26: #{conv_block_forward.2} parent=0 // pred_check
    _
  $region27: #{conv_block_forward.2} parent=0 // pred_check_branch
    %1067 = sbr.rel (0) target = $region29
  $region28: #{conv_block_forward.2} parent=0 // pred_region
    _
  $region29: #{conv_block_forward.2} parent=0 // pred_fallthru
    _
  // Predicated region
  $region30: #{conv_block_forward.2} parent=0 // pred_check
    _
  $region31: #{conv_block_forward.2} parent=0 // pred_check_branch
    %1069 = sbr.rel (0) target = $region33
  $region32: #{conv_block_forward.2} parent=0 // pred_region
    _
  $region33: #{conv_block_forward.2} parent=0 // pred_fallthru
    _
  // Predicated region
  $region34: #{conv_block_forward.2} parent=0 // pred_check
    _
  $region35: #{conv_block_forward.2} parent=0 // pred_check_branch
    %1071 = sbr.rel (0) target = $region37
  $region36: #{conv_block_forward.2} parent=0 // pred_region
    _
  $region37: #{conv_block_forward.2} parent=0 // pred_fallthru
    _
  // Predicated region
  $region38: #{conv_block_forward.2} parent=0 // pred_check
    _
  $region39: #{conv_block_forward.2} parent=0 // pred_check_branch
    %1073 = sbr.rel (0) target = $region41
  $region40: #{conv_block_forward.2} parent=0 // pred_region
    _
  $region41: #{conv_block_forward.2} parent=0 // pred_fallthru
    _

</llo_original>
